<compile_context>
chip_gen: v6e
topology: v6e:2x2x1
jax: 0.10.0
libtpu: 0.0.40
codegen_flags: <defaults>
</compile_context>

<pallas_src>
import jax
import jax.numpy as jnp
from jax.experimental import pallas as pl
from jax.experimental.pallas import tpu as pltpu


def lstm_recurrence_kernel(gx_ref, w_hh_ref, h_out_ref, h_sc, c_sc):
    """One grid step == one chunk of Tc LSTM time steps.

    gx_ref   : (Tc, B_pad, 4H) bf16  precomputed x_t @ W_ih + (b_ih + b_hh)
    w_hh_ref : (H, 4H)        bf16   resident recurrent weight (transposed vs PyTorch)
    h_out_ref: (B_pad, H)     f32    written once, at the last chunk (== h_T)
    h_sc/c_sc: (B_pad, H)     f32    LSTM state, persists across grid steps
    Gate order: i, f, g, o (PyTorch order).
    """
    blk = pl.program_id(0)
    H = h_sc.shape[-1]
    Tc = gx_ref.shape[0]

    @pl.when(blk == 0)
    def _init():
        h_sc[...] = jnp.zeros_like(h_sc)
        c_sc[...] = jnp.zeros_like(c_sc)

    w_hh = w_hh_ref[...]                 # (H, 4H) bf16, loaded once per chunk
    h0 = h_sc[...]                       # cross-chunk state: one load per chunk
    c0 = c_sc[...]

    def sigmoid(x):                      # single EUP op per gate (vs exp + recip + div)
        return 0.5 * (jnp.tanh(0.5 * x) + 1.0)

    def step(t, carry):
        h, c, h_bf16 = carry
        # Only the recurrent matmul sits on the serial path besides the gate math
        # (bf16 operands, f32 accumulation). gx already holds x_t @ W_ih + biases.
        # TODO(synk): hold W_hh in MXU staging registers across the chunk
        # (pltpu.matmul_push_rhs / matmul_acc_lhs / matmul_pop) to avoid re-staging the
        # 128x512 bf16 RHS on every step.
        gates = gx_ref[t].astype(jnp.float32) + jnp.dot(
            h_bf16, w_hh, preferred_element_type=jnp.float32)       # (B_pad, 4H)
        i = sigmoid(gates[:, 0 * H:1 * H])
        f = sigmoid(gates[:, 1 * H:2 * H])
        g = jnp.tanh(gates[:, 2 * H:3 * H])
        o = sigmoid(gates[:, 3 * H:4 * H])
        c_new = f * c + i * g
        h_new = o * jnp.tanh(c_new)
        # bf16 copy produced here (overlaps the previous step's epilogue), ready as the
        # next step's matmul LHS without a cast on its critical path.
        return h_new, c_new, h_new.astype(w_hh.dtype)

    h_T, c_T, _ = jax.lax.fori_loop(
        0, Tc, step, (h0, c0, h0.astype(w_hh.dtype)), unroll=True)

    # State round-trips VMEM once per chunk (not once per step).
    h_sc[...] = h_T
    c_sc[...] = c_T

    @pl.when(blk == pl.num_programs(0) - 1)
    def _finalize():
        h_out_ref[...] = h_T


def _choose_time_chunk(T, max_chunk=32):
    """Split the time axis into n near-equal chunks of size <= max_chunk.

    Returns (Tc, T_pad) with T_pad = n * Tc >= T and T_pad - T < n (minimal padding), so
    arbitrary (prime/odd) T never falls back to Tc=1.
    """
    n = -(-T // max_chunk)
    Tc = -(-T // n)
    return Tc, n * Tc


@jax.jit
def rnn_model_forward(text_indices, emb_table, w_ih, w_hh, b_gates, w_fc, b_fc):
    """text_indices: (B, T) int32. Returns logits (B, num_classes)."""
    B, T = text_indices.shape
    E = emb_table.shape[1]
    H = w_hh.shape[0]

    # >= 16 sublanes so the bf16 recurrent-matmul LHS fills whole packed (16,128) vregs.
    B_pad = max(16, ((B + 7) // 8) * 8)
    # v7x budget: 2 * Tc * B_pad * 4H * 2B (bf16 gx, double-buffered) stays well under the
    # 64 MiB VMEM at max_chunk=32 even for B_pad=256 (~16 MiB).
    Tc, T_pad = _choose_time_chunk(T, max_chunk=32)

    # ---- XLA glue (parallel work, off the serial recurrence path) ----
    # TODO(synk): for long T, pipeline this projection against the recurrence in macro-chunks
    # (cross-pallas_call prefetch) so the second TensorCore on v7x is not idle.
    idx_pad = jnp.pad(text_indices, ((0, B_pad - B), (0, 0)))            # (B_pad, T)
    x_tbe = jnp.take(emb_table, idx_pad.T, axis=0)                       # (T, B_pad, E)

    # One big bf16 input-projection matmul for all T steps, biases fused, stored bf16.
    gx = jnp.dot(x_tbe.reshape(T * B_pad, E).astype(jnp.bfloat16),
                 w_ih.astype(jnp.bfloat16),
                 preferred_element_type=jnp.float32).reshape(T, B_pad, 4 * H)
    gx = (gx + b_gates).astype(jnp.bfloat16)                             # (T, B_pad, 4H)

    # FRONT-pad the time axis with identity pre-activations: i-gate = -30 -> sigmoid = 0,
    # g-gate = 0 -> tanh = 0, so with zero initial state (h, c) stay exactly 0 through the
    # pad steps and the real sequence ends exactly at the last grid step.
    if T_pad > T:
        pad_len = T_pad - T
        neg = jnp.full((pad_len, B_pad, H), -30.0, jnp.bfloat16)
        zer = jnp.zeros((pad_len, B_pad, H), jnp.bfloat16)
        gx = jnp.concatenate(
            [jnp.concatenate([neg, zer, zer, neg], axis=-1), gx], axis=0)

    w_hh_bf16 = w_hh.astype(jnp.bfloat16)

    # Explicit VMEM budget (double-buffered gx chunk + weight + state + headroom).
    gx_block_bytes = Tc * B_pad * 4 * H * 2
    w_hh_bytes = H * 4 * H * 2
    state_bytes = 4 * B_pad * H * 4
    vmem_limit = int(min(48 * 1024 * 1024,
                         max(16 * 1024 * 1024,
                             2 * gx_block_bytes + 2 * w_hh_bytes + state_bytes
                             + 4 * 1024 * 1024)))

    grid_spec = pltpu.PrefetchScalarGridSpec(
        num_scalar_prefetch=0,
        grid=(T_pad // Tc,),
        in_specs=[
            pl.BlockSpec((Tc, B_pad, 4 * H), lambda b: (b, 0, 0)),       # gx chunk (bf16)
            # NOTE: constant-index resident weight; at production hidden sizes add
            # pipeline_mode=pl.Buffered(1) to drop its second VMEM buffer. Left off here:
            # zero impact at H=128 (128 KiB) and keeps the compile path maximally plain.
            pl.BlockSpec((H, 4 * H), lambda b: (0, 0)),                  # W_hh^T (bf16)
        ],
        out_specs=pl.BlockSpec((B_pad, H), lambda b: (0, 0)),            # h_T (lane-dense)
        scratch_shapes=[
            pltpu.VMEM((B_pad, H), jnp.float32),   # h (cross-chunk carry)
            pltpu.VMEM((B_pad, H), jnp.float32),   # c (cross-chunk carry)
        ],
    )

    h_last = pl.pallas_call(
        lstm_recurrence_kernel,
        out_shape=jax.ShapeDtypeStruct((B_pad, H), jnp.float32),
        grid_spec=grid_spec,
        compiler_params=pltpu.CompilerParams(
            dimension_semantics=("arbitrary",),    # recurrence: must run in order
            vmem_limit_bytes=vmem_limit),
    )(gx, w_hh_bf16)

    # last_rnn_output = h_T ; dropout(eval) = identity ; tiny fc (H x 24) stays in XLA.
    return h_last[:B] @ w_fc + b_fc


def reference_forward(text_indices, emb_table, w_ih, w_hh, b_gates, w_fc, b_fc):
    """Pure-JAX f32 reference matching PyTorch LSTM semantics (num_layers=1, unidirectional)."""
    x_emb = jnp.take(emb_table, text_indices, axis=0)      # (B, T, E)
    x_tbe = jnp.transpose(x_emb, (1, 0, 2))                # (T, B, E)
    B = x_emb.shape[0]
    H = w_hh.shape[0]

    def step(carry, x_t):
        h, c = carry
        gates = x_t @ w_ih + h @ w_hh + b_gates
        i = jax.nn.sigmoid(gates[:, 0 * H:1 * H])
        f = jax.nn.sigmoid(gates[:, 1 * H:2 * H])
        g = jnp.tanh(gates[:, 2 * H:3 * H])
        o = jax.nn.sigmoid(gates[:, 3 * H:4 * H])
        c = f * c + i * g
        h = o * jnp.tanh(c)
        return (h, c), None

    init = (jnp.zeros((B, H), jnp.float32), jnp.zeros((B, H), jnp.float32))
    (h_last, _), _ = jax.lax.scan(step, init, x_tbe)
    return h_last @ w_fc + b_fc


if __name__ == "__main__":
    # Small, module-consistent shapes (embedding_dim=256, hidden_dim=128, num_classes=24).
    VOCAB = 64          # vocab_size (small for the demo; module default 1409)
    E = 256             # embedding_dim
    H = 128             # hidden_dim
    C = 24              # num_classes

    key = jax.random.PRNGKey(0)
    k_emb, k_wih, k_whh, k_bih, k_bhh, k_wfc, k_bfc, k_idx = jax.random.split(key, 8)

    emb_table = jax.random.normal(k_emb, (VOCAB, E), jnp.float32)
    scale = 1.0 / jnp.sqrt(H).astype(jnp.float32)
    # PyTorch stores weight_ih_l0 as (4H, E); we keep the transposed (E, 4H) layout.
    w_ih = jax.random.uniform(k_wih, (E, 4 * H), jnp.float32, -scale, scale)
    w_hh = jax.random.uniform(k_whh, (H, 4 * H), jnp.float32, -scale, scale)
    b_ih = jax.random.uniform(k_bih, (4 * H,), jnp.float32, -scale, scale)
    b_hh = jax.random.uniform(k_bhh, (4 * H,), jnp.float32, -scale, scale)
    b_gates = (b_ih + b_hh).reshape(1, 4 * H)
    # PyTorch fc weight is (C, in); we keep (in, C).
    w_fc = jax.random.uniform(k_wfc, (H, C), jnp.float32, -scale, scale)
    b_fc = jax.random.uniform(k_bfc, (1, C), jnp.float32, -scale, scale)

    # Primary check: B=2, T=8 (single chunk, no padding).
    B, T = 2, 8
    text_indices = jax.random.randint(k_idx, (B, T), 0, VOCAB, dtype=jnp.int32)
    out = rnn_model_forward(text_indices, emb_table, w_ih, w_hh, b_gates, w_fc, b_fc)
    out = jax.block_until_ready(out)
    ref = reference_forward(text_indices, emb_table, w_ih, w_hh, b_gates, w_fc, b_fc)
    assert out.shape == (B, C), out.shape
    assert jnp.allclose(out, ref, rtol=2e-2, atol=2e-2), (out, ref)

    # Secondary check: odd B and T=35 (multi-chunk grid + front identity padding).
    B2, T2 = 3, 35
    idx2 = jax.random.randint(jax.random.PRNGKey(1), (B2, T2), 0, VOCAB, dtype=jnp.int32)
    out2 = rnn_model_forward(idx2, emb_table, w_ih, w_hh, b_gates, w_fc, b_fc)
    out2 = jax.block_until_ready(out2)
    ref2 = reference_forward(idx2, emb_table, w_ih, w_hh, b_gates, w_fc, b_fc)
    assert out2.shape == (B2, C), out2.shape
    assert jnp.allclose(out2, ref2, rtol=2e-2, atol=2e-2), (out2, ref2)

    print("KERNEL_OK")
</pallas_src>

<mosaic_0001>
module attributes {stable_mosaic.version = 11 : i64} {
  func.func @lstm_recurrence_kernel(%arg0: i32, %arg1: memref<8x16x512xbf16, #tpu.memory_space<vmem>>, %arg2: memref<128x512xbf16, #tpu.memory_space<vmem>>, %arg3: memref<16x128xf32, #tpu.memory_space<vmem>>, %arg4: memref<16x128xf32, #tpu.memory_space<vmem>>, %arg5: memref<16x128xf32, #tpu.memory_space<vmem>>) attributes {dimension_semantics = [#tpu.dimension_semantics<arbitrary>], iteration_bounds = array<i64: 1>, scalar_prefetch = 0 : i64, scratch_operands = 2 : i64, tpu.core_type = #tpu.core_type<tc>, window_params = [{transform_indices = @transform_0, window_bounds = array<i64: 8, 16, 512>}, {pipeline_mode = #tpu.pipeline_mode<synchronous>, transform_indices = @transform_1, window_bounds = array<i64: 128, 512>}, {pipeline_mode = #tpu.pipeline_mode<synchronous>, transform_indices = @transform_2, window_bounds = array<i64: 16, 128>}]} {
    %c0_i32 = arith.constant 0 : i32
    %0 = arith.cmpi eq, %arg0, %c0_i32 : i32
    %1 = arith.extui %0 : i1 to i32
    %c0_i32_0 = arith.constant 0 : i32
    %2 = arith.cmpi ne, %1, %c0_i32_0 : i32
    scf.if %2 {
      %cst_108 = arith.constant 0.000000e+00 : f32
      %316 = vector.broadcast %cst_108 : f32 to vector<16x128xf32>
      %c0_109 = arith.constant 0 : index
      %c0_110 = arith.constant 0 : index
      %317 = vector.load %arg4[%c0_109, %c0_110] : memref<16x128xf32, #tpu.memory_space<vmem>>, vector<16x128xf32>
      tpu.vector_store %arg4[%c0_109, %c0_110], %316 {strides = array<i32>} : memref<16x128xf32, #tpu.memory_space<vmem>>, vector<16x128xf32>,
      %cst_111 = arith.constant 0.000000e+00 : f32
      %318 = vector.broadcast %cst_111 : f32 to vector<16x128xf32>
      %c0_112 = arith.constant 0 : index
      %c0_113 = arith.constant 0 : index
      %319 = vector.load %arg5[%c0_112, %c0_113] : memref<16x128xf32, #tpu.memory_space<vmem>>, vector<16x128xf32>
      tpu.vector_store %arg5[%c0_112, %c0_113], %318 {strides = array<i32>} : memref<16x128xf32, #tpu.memory_space<vmem>>, vector<16x128xf32>,
    } else {
    }
    %c0 = arith.constant 0 : index
    %c0_1 = arith.constant 0 : index
    %3 = vector.load %arg2[%c0, %c0_1] : memref<128x512xbf16, #tpu.memory_space<vmem>>, vector<128x512xbf16>
    %c0_2 = arith.constant 0 : index
    %c0_3 = arith.constant 0 : index
    %4 = vector.load %arg4[%c0_2, %c0_3] : memref<16x128xf32, #tpu.memory_space<vmem>>, vector<16x128xf32>
    %c0_4 = arith.constant 0 : index
    %c0_5 = arith.constant 0 : index
    %5 = vector.load %arg5[%c0_4, %c0_5] : memref<16x128xf32, #tpu.memory_space<vmem>>, vector<16x128xf32>
    %6 = arith.truncf %4 : vector<16x128xf32> to vector<16x128xbf16>
    %c0_i32_6 = arith.constant 0 : i32
    %7 = arith.index_cast %c0_i32_6 : i32 to index
    %c0_7 = arith.constant 0 : index
    %c0_8 = arith.constant 0 : index
    %8 = vector.load %arg1[%7, %c0_7, %c0_8] : memref<8x16x512xbf16, #tpu.memory_space<vmem>>, vector<1x16x512xbf16>
    %9 = vector.shape_cast %8 : vector<1x16x512xbf16> to vector<16x512xbf16>
    %10 = arith.extf %9 : vector<16x512xbf16> to vector<16x512xf32>
    %cst = arith.constant dense<0.000000e+00> : vector<16x512xf32>
    %11 = tpu.matmul %6, %3, %cst {dimension_numbers = #tpu.dot_dimension_numbers<[1], [0], [0], [1], [0, 0, 1, 1], [], []>} : vector<16x128xbf16>, vector<128x512xbf16>, vector<16x512xf32> -> vector<16x512xf32>
    %12 = arith.addf %10, %11 : vector<16x512xf32>
    %13 = vector.extract_strided_slice %12 {offsets = [0, 0], sizes = [16, 128], strides = [1, 1]} : vector<16x512xf32> to vector<16x128xf32>
    %cst_9 = arith.constant 5.000000e-01 : f32
    %14 = vector.broadcast %cst_9 : f32 to vector<16x128xf32>
    %15 = arith.mulf %14, %13 : vector<16x128xf32>
    %16 = math.tanh %15 : vector<16x128xf32>
    %cst_10 = arith.constant 1.000000e+00 : f32
    %17 = vector.broadcast %cst_10 : f32 to vector<16x128xf32>
    %18 = arith.addf %16, %17 : vector<16x128xf32>
    %cst_11 = arith.constant 5.000000e-01 : f32
    %19 = vector.broadcast %cst_11 : f32 to vector<16x128xf32>
    %20 = arith.mulf %19, %18 : vector<16x128xf32>
    %21 = vector.extract_strided_slice %12 {offsets = [0, 128], sizes = [16, 128], strides = [1, 1]} : vector<16x512xf32> to vector<16x128xf32>
    %cst_12 = arith.constant 5.000000e-01 : f32
    %22 = vector.broadcast %cst_12 : f32 to vector<16x128xf32>
    %23 = arith.mulf %22, %21 : vector<16x128xf32>
    %24 = math.tanh %23 : vector<16x128xf32>
    %cst_13 = arith.constant 1.000000e+00 : f32
    %25 = vector.broadcast %cst_13 : f32 to vector<16x128xf32>
    %26 = arith.addf %24, %25 : vector<16x128xf32>
    %cst_14 = arith.constant 5.000000e-01 : f32
    %27 = vector.broadcast %cst_14 : f32 to vector<16x128xf32>
    %28 = arith.mulf %27, %26 : vector<16x128xf32>
    %29 = vector.extract_strided_slice %12 {offsets = [0, 256], sizes = [16, 128], strides = [1, 1]} : vector<16x512xf32> to vector<16x128xf32>
    %30 = math.tanh %29 : vector<16x128xf32>
    %31 = vector.extract_strided_slice %12 {offsets = [0, 384], sizes = [16, 128], strides = [1, 1]} : vector<16x512xf32> to vector<16x128xf32>
    %cst_15 = arith.constant 5.000000e-01 : f32
    %32 = vector.broadcast %cst_15 : f32 to vector<16x128xf32>
    %33 = arith.mulf %32, %31 : vector<16x128xf32>
    %34 = math.tanh %33 : vector<16x128xf32>
    %cst_16 = arith.constant 1.000000e+00 : f32
    %35 = vector.broadcast %cst_16 : f32 to vector<16x128xf32>
    %36 = arith.addf %34, %35 : vector<16x128xf32>
    %cst_17 = arith.constant 5.000000e-01 : f32
    %37 = vector.broadcast %cst_17 : f32 to vector<16x128xf32>
    %38 = arith.mulf %37, %36 : vector<16x128xf32>
    %39 = arith.mulf %28, %5 : vector<16x128xf32>
    %40 = arith.mulf %20, %30 : vector<16x128xf32>
    %41 = arith.addf %39, %40 : vector<16x128xf32>
    %42 = math.tanh %41 : vector<16x128xf32>
    %43 = arith.mulf %38, %42 : vector<16x128xf32>
    %44 = arith.truncf %43 : vector<16x128xf32> to vector<16x128xbf16>
    %c1_i32 = arith.constant 1 : i32
    %45 = arith.index_cast %c1_i32 : i32 to index
    %c0_18 = arith.constant 0 : index
    %c0_19 = arith.constant 0 : index
    %46 = vector.load %arg1[%45, %c0_18, %c0_19] : memref<8x16x512xbf16, #tpu.memory_space<vmem>>, vector<1x16x512xbf16>
    %47 = vector.shape_cast %46 : vector<1x16x512xbf16> to vector<16x512xbf16>
    %48 = arith.extf %47 : vector<16x512xbf16> to vector<16x512xf32>
    %cst_20 = arith.constant dense<0.000000e+00> : vector<16x512xf32>
    %49 = tpu.matmul %44, %3, %cst_20 {dimension_numbers = #tpu.dot_dimension_numbers<[1], [0], [0], [1], [0, 0, 1, 1], [], []>} : vector<16x128xbf16>, vector<128x512xbf16>, vector<16x512xf32> -> vector<16x512xf32>
    %50 = arith.addf %48, %49 : vector<16x512xf32>
    %51 = vector.extract_strided_slice %50 {offsets = [0, 0], sizes = [16, 128], strides = [1, 1]} : vector<16x512xf32> to vector<16x128xf32>
    %cst_21 = arith.constant 5.000000e-01 : f32
    %52 = vector.broadcast %cst_21 : f32 to vector<16x128xf32>
    %53 = arith.mulf %52, %51 : vector<16x128xf32>
    %54 = math.tanh %53 : vector<16x128xf32>
    %cst_22 = arith.constant 1.000000e+00 : f32
    %55 = vector.broadcast %cst_22 : f32 to vector<16x128xf32>
    %56 = arith.addf %54, %55 : vector<16x128xf32>
    %cst_23 = arith.constant 5.000000e-01 : f32
    %57 = vector.broadcast %cst_23 : f32 to vector<16x128xf32>
    %58 = arith.mulf %57, %56 : vector<16x128xf32>
    %59 = vector.extract_strided_slice %50 {offsets = [0, 128], sizes = [16, 128], strides = [1, 1]} : vector<16x512xf32> to vector<16x128xf32>
    %cst_24 = arith.constant 5.000000e-01 : f32
    %60 = vector.broadcast %cst_24 : f32 to vector<16x128xf32>
    %61 = arith.mulf %60, %59 : vector<16x128xf32>
    %62 = math.tanh %61 : vector<16x128xf32>
    %cst_25 = arith.constant 1.000000e+00 : f32
    %63 = vector.broadcast %cst_25 : f32 to vector<16x128xf32>
    %64 = arith.addf %62, %63 : vector<16x128xf32>
    %cst_26 = arith.constant 5.000000e-01 : f32
    %65 = vector.broadcast %cst_26 : f32 to vector<16x128xf32>
    %66 = arith.mulf %65, %64 : vector<16x128xf32>
    %67 = vector.extract_strided_slice %50 {offsets = [0, 256], sizes = [16, 128], strides = [1, 1]} : vector<16x512xf32> to vector<16x128xf32>
    %68 = math.tanh %67 : vector<16x128xf32>
    %69 = vector.extract_strided_slice %50 {offsets = [0, 384], sizes = [16, 128], strides = [1, 1]} : vector<16x512xf32> to vector<16x128xf32>
    %cst_27 = arith.constant 5.000000e-01 : f32
    %70 = vector.broadcast %cst_27 : f32 to vector<16x128xf32>
    %71 = arith.mulf %70, %69 : vector<16x128xf32>
    %72 = math.tanh %71 : vector<16x128xf32>
    %cst_28 = arith.constant 1.000000e+00 : f32
    %73 = vector.broadcast %cst_28 : f32 to vector<16x128xf32>
    %74 = arith.addf %72, %73 : vector<16x128xf32>
    %cst_29 = arith.constant 5.000000e-01 : f32
    %75 = vector.broadcast %cst_29 : f32 to vector<16x128xf32>
    %76 = arith.mulf %75, %74 : vector<16x128xf32>
    %77 = arith.mulf %66, %41 : vector<16x128xf32>
    %78 = arith.mulf %58, %68 : vector<16x128xf32>
    %79 = arith.addf %77, %78 : vector<16x128xf32>
    %80 = math.tanh %79 : vector<16x128xf32>
    %81 = arith.mulf %76, %80 : vector<16x128xf32>
    %82 = arith.truncf %81 : vector<16x128xf32> to vector<16x128xbf16>
    %c2_i32 = arith.constant 2 : i32
    %83 = arith.index_cast %c2_i32 : i32 to index
    %c0_30 = arith.constant 0 : index
    %c0_31 = arith.constant 0 : index
    %84 = vector.load %arg1[%83, %c0_30, %c0_31] : memref<8x16x512xbf16, #tpu.memory_space<vmem>>, vector<1x16x512xbf16>
    %85 = vector.shape_cast %84 : vector<1x16x512xbf16> to vector<16x512xbf16>
    %86 = arith.extf %85 : vector<16x512xbf16> to vector<16x512xf32>
    %cst_32 = arith.constant dense<0.000000e+00> : vector<16x512xf32>
    %87 = tpu.matmul %82, %3, %cst_32 {dimension_numbers = #tpu.dot_dimension_numbers<[1], [0], [0], [1], [0, 0, 1, 1], [], []>} : vector<16x128xbf16>, vector<128x512xbf16>, vector<16x512xf32> -> vector<16x512xf32>
    %88 = arith.addf %86, %87 : vector<16x512xf32>
    %89 = vector.extract_strided_slice %88 {offsets = [0, 0], sizes = [16, 128], strides = [1, 1]} : vector<16x512xf32> to vector<16x128xf32>
    %cst_33 = arith.constant 5.000000e-01 : f32
    %90 = vector.broadcast %cst_33 : f32 to vector<16x128xf32>
    %91 = arith.mulf %90, %89 : vector<16x128xf32>
    %92 = math.tanh %91 : vector<16x128xf32>
    %cst_34 = arith.constant 1.000000e+00 : f32
    %93 = vector.broadcast %cst_34 : f32 to vector<16x128xf32>
    %94 = arith.addf %92, %93 : vector<16x128xf32>
    %cst_35 = arith.constant 5.000000e-01 : f32
    %95 = vector.broadcast %cst_35 : f32 to vector<16x128xf32>
    %96 = arith.mulf %95, %94 : vector<16x128xf32>
    %97 = vector.extract_strided_slice %88 {offsets = [0, 128], sizes = [16, 128], strides = [1, 1]} : vector<16x512xf32> to vector<16x128xf32>
    %cst_36 = arith.constant 5.000000e-01 : f32
    %98 = vector.broadcast %cst_36 : f32 to vector<16x128xf32>
    %99 = arith.mulf %98, %97 : vector<16x128xf32>
    %100 = math.tanh %99 : vector<16x128xf32>
    %cst_37 = arith.constant 1.000000e+00 : f32
    %101 = vector.broadcast %cst_37 : f32 to vector<16x128xf32>
    %102 = arith.addf %100, %101 : vector<16x128xf32>
    %cst_38 = arith.constant 5.000000e-01 : f32
    %103 = vector.broadcast %cst_38 : f32 to vector<16x128xf32>
    %104 = arith.mulf %103, %102 : vector<16x128xf32>
    %105 = vector.extract_strided_slice %88 {offsets = [0, 256], sizes = [16, 128], strides = [1, 1]} : vector<16x512xf32> to vector<16x128xf32>
    %106 = math.tanh %105 : vector<16x128xf32>
    %107 = vector.extract_strided_slice %88 {offsets = [0, 384], sizes = [16, 128], strides = [1, 1]} : vector<16x512xf32> to vector<16x128xf32>
    %cst_39 = arith.constant 5.000000e-01 : f32
    %108 = vector.broadcast %cst_39 : f32 to vector<16x128xf32>
    %109 = arith.mulf %108, %107 : vector<16x128xf32>
    %110 = math.tanh %109 : vector<16x128xf32>
    %cst_40 = arith.constant 1.000000e+00 : f32
    %111 = vector.broadcast %cst_40 : f32 to vector<16x128xf32>
    %112 = arith.addf %110, %111 : vector<16x128xf32>
    %cst_41 = arith.constant 5.000000e-01 : f32
    %113 = vector.broadcast %cst_41 : f32 to vector<16x128xf32>
    %114 = arith.mulf %113, %112 : vector<16x128xf32>
    %115 = arith.mulf %104, %79 : vector<16x128xf32>
    %116 = arith.mulf %96, %106 : vector<16x128xf32>
    %117 = arith.addf %115, %116 : vector<16x128xf32>
    %118 = math.tanh %117 : vector<16x128xf32>
    %119 = arith.mulf %114, %118 : vector<16x128xf32>
    %120 = arith.truncf %119 : vector<16x128xf32> to vector<16x128xbf16>
    %c3_i32 = arith.constant 3 : i32
    %121 = arith.index_cast %c3_i32 : i32 to index
    %c0_42 = arith.constant 0 : index
    %c0_43 = arith.constant 0 : index
    %122 = vector.load %arg1[%121, %c0_42, %c0_43] : memref<8x16x512xbf16, #tpu.memory_space<vmem>>, vector<1x16x512xbf16>
    %123 = vector.shape_cast %122 : vector<1x16x512xbf16> to vector<16x512xbf16>
    %124 = arith.extf %123 : vector<16x512xbf16> to vector<16x512xf32>
    %cst_44 = arith.constant dense<0.000000e+00> : vector<16x512xf32>
    %125 = tpu.matmul %120, %3, %cst_44 {dimension_numbers = #tpu.dot_dimension_numbers<[1], [0], [0], [1], [0, 0, 1, 1], [], []>} : vector<16x128xbf16>, vector<128x512xbf16>, vector<16x512xf32> -> vector<16x512xf32>
    %126 = arith.addf %124, %125 : vector<16x512xf32>
    %127 = vector.extract_strided_slice %126 {offsets = [0, 0], sizes = [16, 128], strides = [1, 1]} : vector<16x512xf32> to vector<16x128xf32>
    %cst_45 = arith.constant 5.000000e-01 : f32
    %128 = vector.broadcast %cst_45 : f32 to vector<16x128xf32>
    %129 = arith.mulf %128, %127 : vector<16x128xf32>
    %130 = math.tanh %129 : vector<16x128xf32>
    %cst_46 = arith.constant 1.000000e+00 : f32
    %131 = vector.broadcast %cst_46 : f32 to vector<16x128xf32>
    %132 = arith.addf %130, %131 : vector<16x128xf32>
    %cst_47 = arith.constant 5.000000e-01 : f32
    %133 = vector.broadcast %cst_47 : f32 to vector<16x128xf32>
    %134 = arith.mulf %133, %132 : vector<16x128xf32>
    %135 = vector.extract_strided_slice %126 {offsets = [0, 128], sizes = [16, 128], strides = [1, 1]} : vector<16x512xf32> to vector<16x128xf32>
    %cst_48 = arith.constant 5.000000e-01 : f32
    %136 = vector.broadcast %cst_48 : f32 to vector<16x128xf32>
    %137 = arith.mulf %136, %135 : vector<16x128xf32>
    %138 = math.tanh %137 : vector<16x128xf32>
    %cst_49 = arith.constant 1.000000e+00 : f32
    %139 = vector.broadcast %cst_49 : f32 to vector<16x128xf32>
    %140 = arith.addf %138, %139 : vector<16x128xf32>
    %cst_50 = arith.constant 5.000000e-01 : f32
    %141 = vector.broadcast %cst_50 : f32 to vector<16x128xf32>
    %142 = arith.mulf %141, %140 : vector<16x128xf32>
    %143 = vector.extract_strided_slice %126 {offsets = [0, 256], sizes = [16, 128], strides = [1, 1]} : vector<16x512xf32> to vector<16x128xf32>
    %144 = math.tanh %143 : vector<16x128xf32>
    %145 = vector.extract_strided_slice %126 {offsets = [0, 384], sizes = [16, 128], strides = [1, 1]} : vector<16x512xf32> to vector<16x128xf32>
    %cst_51 = arith.constant 5.000000e-01 : f32
    %146 = vector.broadcast %cst_51 : f32 to vector<16x128xf32>
    %147 = arith.mulf %146, %145 : vector<16x128xf32>
    %148 = math.tanh %147 : vector<16x128xf32>
    %cst_52 = arith.constant 1.000000e+00 : f32
    %149 = vector.broadcast %cst_52 : f32 to vector<16x128xf32>
    %150 = arith.addf %148, %149 : vector<16x128xf32>
    %cst_53 = arith.constant 5.000000e-01 : f32
    %151 = vector.broadcast %cst_53 : f32 to vector<16x128xf32>
    %152 = arith.mulf %151, %150 : vector<16x128xf32>
    %153 = arith.mulf %142, %117 : vector<16x128xf32>
    %154 = arith.mulf %134, %144 : vector<16x128xf32>
    %155 = arith.addf %153, %154 : vector<16x128xf32>
    %156 = math.tanh %155 : vector<16x128xf32>
    %157 = arith.mulf %152, %156 : vector<16x128xf32>
    %158 = arith.truncf %157 : vector<16x128xf32> to vector<16x128xbf16>
    %c4_i32 = arith.constant 4 : i32
    %159 = arith.index_cast %c4_i32 : i32 to index
    %c0_54 = arith.constant 0 : index
    %c0_55 = arith.constant 0 : index
    %160 = vector.load %arg1[%159, %c0_54, %c0_55] : memref<8x16x512xbf16, #tpu.memory_space<vmem>>, vector<1x16x512xbf16>
    %161 = vector.shape_cast %160 : vector<1x16x512xbf16> to vector<16x512xbf16>
    %162 = arith.extf %161 : vector<16x512xbf16> to vector<16x512xf32>
    %cst_56 = arith.constant dense<0.000000e+00> : vector<16x512xf32>
    %163 = tpu.matmul %158, %3, %cst_56 {dimension_numbers = #tpu.dot_dimension_numbers<[1], [0], [0], [1], [0, 0, 1, 1], [], []>} : vector<16x128xbf16>, vector<128x512xbf16>, vector<16x512xf32> -> vector<16x512xf32>
    %164 = arith.addf %162, %163 : vector<16x512xf32>
    %165 = vector.extract_strided_slice %164 {offsets = [0, 0], sizes = [16, 128], strides = [1, 1]} : vector<16x512xf32> to vector<16x128xf32>
    %cst_57 = arith.constant 5.000000e-01 : f32
    %166 = vector.broadcast %cst_57 : f32 to vector<16x128xf32>
    %167 = arith.mulf %166, %165 : vector<16x128xf32>
    %168 = math.tanh %167 : vector<16x128xf32>
    %cst_58 = arith.constant 1.000000e+00 : f32
    %169 = vector.broadcast %cst_58 : f32 to vector<16x128xf32>
    %170 = arith.addf %168, %169 : vector<16x128xf32>
    %cst_59 = arith.constant 5.000000e-01 : f32
    %171 = vector.broadcast %cst_59 : f32 to vector<16x128xf32>
    %172 = arith.mulf %171, %170 : vector<16x128xf32>
    %173 = vector.extract_strided_slice %164 {offsets = [0, 128], sizes = [16, 128], strides = [1, 1]} : vector<16x512xf32> to vector<16x128xf32>
    %cst_60 = arith.constant 5.000000e-01 : f32
    %174 = vector.broadcast %cst_60 : f32 to vector<16x128xf32>
    %175 = arith.mulf %174, %173 : vector<16x128xf32>
    %176 = math.tanh %175 : vector<16x128xf32>
    %cst_61 = arith.constant 1.000000e+00 : f32
    %177 = vector.broadcast %cst_61 : f32 to vector<16x128xf32>
    %178 = arith.addf %176, %177 : vector<16x128xf32>
    %cst_62 = arith.constant 5.000000e-01 : f32
    %179 = vector.broadcast %cst_62 : f32 to vector<16x128xf32>
    %180 = arith.mulf %179, %178 : vector<16x128xf32>
    %181 = vector.extract_strided_slice %164 {offsets = [0, 256], sizes = [16, 128], strides = [1, 1]} : vector<16x512xf32> to vector<16x128xf32>
    %182 = math.tanh %181 : vector<16x128xf32>
    %183 = vector.extract_strided_slice %164 {offsets = [0, 384], sizes = [16, 128], strides = [1, 1]} : vector<16x512xf32> to vector<16x128xf32>
    %cst_63 = arith.constant 5.000000e-01 : f32
    %184 = vector.broadcast %cst_63 : f32 to vector<16x128xf32>
    %185 = arith.mulf %184, %183 : vector<16x128xf32>
    %186 = math.tanh %185 : vector<16x128xf32>
    %cst_64 = arith.constant 1.000000e+00 : f32
    %187 = vector.broadcast %cst_64 : f32 to vector<16x128xf32>
    %188 = arith.addf %186, %187 : vector<16x128xf32>
    %cst_65 = arith.constant 5.000000e-01 : f32
    %189 = vector.broadcast %cst_65 : f32 to vector<16x128xf32>
    %190 = arith.mulf %189, %188 : vector<16x128xf32>
    %191 = arith.mulf %180, %155 : vector<16x128xf32>
    %192 = arith.mulf %172, %182 : vector<16x128xf32>
    %193 = arith.addf %191, %192 : vector<16x128xf32>
    %194 = math.tanh %193 : vector<16x128xf32>
    %195 = arith.mulf %190, %194 : vector<16x128xf32>
    %196 = arith.truncf %195 : vector<16x128xf32> to vector<16x128xbf16>
    %c5_i32 = arith.constant 5 : i32
    %197 = arith.index_cast %c5_i32 : i32 to index
    %c0_66 = arith.constant 0 : index
    %c0_67 = arith.constant 0 : index
    %198 = vector.load %arg1[%197, %c0_66, %c0_67] : memref<8x16x512xbf16, #tpu.memory_space<vmem>>, vector<1x16x512xbf16>
    %199 = vector.shape_cast %198 : vector<1x16x512xbf16> to vector<16x512xbf16>
    %200 = arith.extf %199 : vector<16x512xbf16> to vector<16x512xf32>
    %cst_68 = arith.constant dense<0.000000e+00> : vector<16x512xf32>
    %201 = tpu.matmul %196, %3, %cst_68 {dimension_numbers = #tpu.dot_dimension_numbers<[1], [0], [0], [1], [0, 0, 1, 1], [], []>} : vector<16x128xbf16>, vector<128x512xbf16>, vector<16x512xf32> -> vector<16x512xf32>
    %202 = arith.addf %200, %201 : vector<16x512xf32>
    %203 = vector.extract_strided_slice %202 {offsets = [0, 0], sizes = [16, 128], strides = [1, 1]} : vector<16x512xf32> to vector<16x128xf32>
    %cst_69 = arith.constant 5.000000e-01 : f32
    %204 = vector.broadcast %cst_69 : f32 to vector<16x128xf32>
    %205 = arith.mulf %204, %203 : vector<16x128xf32>
    %206 = math.tanh %205 : vector<16x128xf32>
    %cst_70 = arith.constant 1.000000e+00 : f32
    %207 = vector.broadcast %cst_70 : f32 to vector<16x128xf32>
    %208 = arith.addf %206, %207 : vector<16x128xf32>
    %cst_71 = arith.constant 5.000000e-01 : f32
    %209 = vector.broadcast %cst_71 : f32 to vector<16x128xf32>
    %210 = arith.mulf %209, %208 : vector<16x128xf32>
    %211 = vector.extract_strided_slice %202 {offsets = [0, 128], sizes = [16, 128], strides = [1, 1]} : vector<16x512xf32> to vector<16x128xf32>
    %cst_72 = arith.constant 5.000000e-01 : f32
    %212 = vector.broadcast %cst_72 : f32 to vector<16x128xf32>
    %213 = arith.mulf %212, %211 : vector<16x128xf32>
    %214 = math.tanh %213 : vector<16x128xf32>
    %cst_73 = arith.constant 1.000000e+00 : f32
    %215 = vector.broadcast %cst_73 : f32 to vector<16x128xf32>
    %216 = arith.addf %214, %215 : vector<16x128xf32>
    %cst_74 = arith.constant 5.000000e-01 : f32
    %217 = vector.broadcast %cst_74 : f32 to vector<16x128xf32>
    %218 = arith.mulf %217, %216 : vector<16x128xf32>
    %219 = vector.extract_strided_slice %202 {offsets = [0, 256], sizes = [16, 128], strides = [1, 1]} : vector<16x512xf32> to vector<16x128xf32>
    %220 = math.tanh %219 : vector<16x128xf32>
    %221 = vector.extract_strided_slice %202 {offsets = [0, 384], sizes = [16, 128], strides = [1, 1]} : vector<16x512xf32> to vector<16x128xf32>
    %cst_75 = arith.constant 5.000000e-01 : f32
    %222 = vector.broadcast %cst_75 : f32 to vector<16x128xf32>
    %223 = arith.mulf %222, %221 : vector<16x128xf32>
    %224 = math.tanh %223 : vector<16x128xf32>
    %cst_76 = arith.constant 1.000000e+00 : f32
    %225 = vector.broadcast %cst_76 : f32 to vector<16x128xf32>
    %226 = arith.addf %224, %225 : vector<16x128xf32>
    %cst_77 = arith.constant 5.000000e-01 : f32
    %227 = vector.broadcast %cst_77 : f32 to vector<16x128xf32>
    %228 = arith.mulf %227, %226 : vector<16x128xf32>
    %229 = arith.mulf %218, %193 : vector<16x128xf32>
    %230 = arith.mulf %210, %220 : vector<16x128xf32>
    %231 = arith.addf %229, %230 : vector<16x128xf32>
    %232 = math.tanh %231 : vector<16x128xf32>
    %233 = arith.mulf %228, %232 : vector<16x128xf32>
    %234 = arith.truncf %233 : vector<16x128xf32> to vector<16x128xbf16>
    %c6_i32 = arith.constant 6 : i32
    %235 = arith.index_cast %c6_i32 : i32 to index
    %c0_78 = arith.constant 0 : index
    %c0_79 = arith.constant 0 : index
    %236 = vector.load %arg1[%235, %c0_78, %c0_79] : memref<8x16x512xbf16, #tpu.memory_space<vmem>>, vector<1x16x512xbf16>
    %237 = vector.shape_cast %236 : vector<1x16x512xbf16> to vector<16x512xbf16>
    %238 = arith.extf %237 : vector<16x512xbf16> to vector<16x512xf32>
    %cst_80 = arith.constant dense<0.000000e+00> : vector<16x512xf32>
    %239 = tpu.matmul %234, %3, %cst_80 {dimension_numbers = #tpu.dot_dimension_numbers<[1], [0], [0], [1], [0, 0, 1, 1], [], []>} : vector<16x128xbf16>, vector<128x512xbf16>, vector<16x512xf32> -> vector<16x512xf32>
    %240 = arith.addf %238, %239 : vector<16x512xf32>
    %241 = vector.extract_strided_slice %240 {offsets = [0, 0], sizes = [16, 128], strides = [1, 1]} : vector<16x512xf32> to vector<16x128xf32>
    %cst_81 = arith.constant 5.000000e-01 : f32
    %242 = vector.broadcast %cst_81 : f32 to vector<16x128xf32>
    %243 = arith.mulf %242, %241 : vector<16x128xf32>
    %244 = math.tanh %243 : vector<16x128xf32>
    %cst_82 = arith.constant 1.000000e+00 : f32
    %245 = vector.broadcast %cst_82 : f32 to vector<16x128xf32>
    %246 = arith.addf %244, %245 : vector<16x128xf32>
    %cst_83 = arith.constant 5.000000e-01 : f32
    %247 = vector.broadcast %cst_83 : f32 to vector<16x128xf32>
    %248 = arith.mulf %247, %246 : vector<16x128xf32>
    %249 = vector.extract_strided_slice %240 {offsets = [0, 128], sizes = [16, 128], strides = [1, 1]} : vector<16x512xf32> to vector<16x128xf32>
    %cst_84 = arith.constant 5.000000e-01 : f32
    %250 = vector.broadcast %cst_84 : f32 to vector<16x128xf32>
    %251 = arith.mulf %250, %249 : vector<16x128xf32>
    %252 = math.tanh %251 : vector<16x128xf32>
    %cst_85 = arith.constant 1.000000e+00 : f32
    %253 = vector.broadcast %cst_85 : f32 to vector<16x128xf32>
    %254 = arith.addf %252, %253 : vector<16x128xf32>
    %cst_86 = arith.constant 5.000000e-01 : f32
    %255 = vector.broadcast %cst_86 : f32 to vector<16x128xf32>
    %256 = arith.mulf %255, %254 : vector<16x128xf32>
    %257 = vector.extract_strided_slice %240 {offsets = [0, 256], sizes = [16, 128], strides = [1, 1]} : vector<16x512xf32> to vector<16x128xf32>
    %258 = math.tanh %257 : vector<16x128xf32>
    %259 = vector.extract_strided_slice %240 {offsets = [0, 384], sizes = [16, 128], strides = [1, 1]} : vector<16x512xf32> to vector<16x128xf32>
    %cst_87 = arith.constant 5.000000e-01 : f32
    %260 = vector.broadcast %cst_87 : f32 to vector<16x128xf32>
    %261 = arith.mulf %260, %259 : vector<16x128xf32>
    %262 = math.tanh %261 : vector<16x128xf32>
    %cst_88 = arith.constant 1.000000e+00 : f32
    %263 = vector.broadcast %cst_88 : f32 to vector<16x128xf32>
    %264 = arith.addf %262, %263 : vector<16x128xf32>
    %cst_89 = arith.constant 5.000000e-01 : f32
    %265 = vector.broadcast %cst_89 : f32 to vector<16x128xf32>
    %266 = arith.mulf %265, %264 : vector<16x128xf32>
    %267 = arith.mulf %256, %231 : vector<16x128xf32>
    %268 = arith.mulf %248, %258 : vector<16x128xf32>
    %269 = arith.addf %267, %268 : vector<16x128xf32>
    %270 = math.tanh %269 : vector<16x128xf32>
    %271 = arith.mulf %266, %270 : vector<16x128xf32>
    %272 = arith.truncf %271 : vector<16x128xf32> to vector<16x128xbf16>
    %c7_i32 = arith.constant 7 : i32
    %273 = arith.index_cast %c7_i32 : i32 to index
    %c0_90 = arith.constant 0 : index
    %c0_91 = arith.constant 0 : index
    %274 = vector.load %arg1[%273, %c0_90, %c0_91] : memref<8x16x512xbf16, #tpu.memory_space<vmem>>, vector<1x16x512xbf16>
    %275 = vector.shape_cast %274 : vector<1x16x512xbf16> to vector<16x512xbf16>
    %276 = arith.extf %275 : vector<16x512xbf16> to vector<16x512xf32>
    %cst_92 = arith.constant dense<0.000000e+00> : vector<16x512xf32>
    %277 = tpu.matmul %272, %3, %cst_92 {dimension_numbers = #tpu.dot_dimension_numbers<[1], [0], [0], [1], [0, 0, 1, 1], [], []>} : vector<16x128xbf16>, vector<128x512xbf16>, vector<16x512xf32> -> vector<16x512xf32>
    %278 = arith.addf %276, %277 : vector<16x512xf32>
    %279 = vector.extract_strided_slice %278 {offsets = [0, 0], sizes = [16, 128], strides = [1, 1]} : vector<16x512xf32> to vector<16x128xf32>
    %cst_93 = arith.constant 5.000000e-01 : f32
    %280 = vector.broadcast %cst_93 : f32 to vector<16x128xf32>
    %281 = arith.mulf %280, %279 : vector<16x128xf32>
    %282 = math.tanh %281 : vector<16x128xf32>
    %cst_94 = arith.constant 1.000000e+00 : f32
    %283 = vector.broadcast %cst_94 : f32 to vector<16x128xf32>
    %284 = arith.addf %282, %283 : vector<16x128xf32>
    %cst_95 = arith.constant 5.000000e-01 : f32
    %285 = vector.broadcast %cst_95 : f32 to vector<16x128xf32>
    %286 = arith.mulf %285, %284 : vector<16x128xf32>
    %287 = vector.extract_strided_slice %278 {offsets = [0, 128], sizes = [16, 128], strides = [1, 1]} : vector<16x512xf32> to vector<16x128xf32>
    %cst_96 = arith.constant 5.000000e-01 : f32
    %288 = vector.broadcast %cst_96 : f32 to vector<16x128xf32>
    %289 = arith.mulf %288, %287 : vector<16x128xf32>
    %290 = math.tanh %289 : vector<16x128xf32>
    %cst_97 = arith.constant 1.000000e+00 : f32
    %291 = vector.broadcast %cst_97 : f32 to vector<16x128xf32>
    %292 = arith.addf %290, %291 : vector<16x128xf32>
    %cst_98 = arith.constant 5.000000e-01 : f32
    %293 = vector.broadcast %cst_98 : f32 to vector<16x128xf32>
    %294 = arith.mulf %293, %292 : vector<16x128xf32>
    %295 = vector.extract_strided_slice %278 {offsets = [0, 256], sizes = [16, 128], strides = [1, 1]} : vector<16x512xf32> to vector<16x128xf32>
    %296 = math.tanh %295 : vector<16x128xf32>
    %297 = vector.extract_strided_slice %278 {offsets = [0, 384], sizes = [16, 128], strides = [1, 1]} : vector<16x512xf32> to vector<16x128xf32>
    %cst_99 = arith.constant 5.000000e-01 : f32
    %298 = vector.broadcast %cst_99 : f32 to vector<16x128xf32>
    %299 = arith.mulf %298, %297 : vector<16x128xf32>
    %300 = math.tanh %299 : vector<16x128xf32>
    %cst_100 = arith.constant 1.000000e+00 : f32
    %301 = vector.broadcast %cst_100 : f32 to vector<16x128xf32>
    %302 = arith.addf %300, %301 : vector<16x128xf32>
    %cst_101 = arith.constant 5.000000e-01 : f32
    %303 = vector.broadcast %cst_101 : f32 to vector<16x128xf32>
    %304 = arith.mulf %303, %302 : vector<16x128xf32>
    %305 = arith.mulf %294, %269 : vector<16x128xf32>
    %306 = arith.mulf %286, %296 : vector<16x128xf32>
    %307 = arith.addf %305, %306 : vector<16x128xf32>
    %308 = math.tanh %307 : vector<16x128xf32>
    %309 = arith.mulf %304, %308 : vector<16x128xf32>
    %310 = arith.truncf %309 : vector<16x128xf32> to vector<16x128xbf16>
    %c8_i32 = arith.constant 8 : i32
    %c0_102 = arith.constant 0 : index
    %c0_103 = arith.constant 0 : index
    %311 = vector.load %arg4[%c0_102, %c0_103] : memref<16x128xf32, #tpu.memory_space<vmem>>, vector<16x128xf32>
    tpu.vector_store %arg4[%c0_102, %c0_103], %309 {strides = array<i32>} : memref<16x128xf32, #tpu.memory_space<vmem>>, vector<16x128xf32>,
    %c0_104 = arith.constant 0 : index
    %c0_105 = arith.constant 0 : index
    %312 = vector.load %arg5[%c0_104, %c0_105] : memref<16x128xf32, #tpu.memory_space<vmem>>, vector<16x128xf32>
    tpu.vector_store %arg5[%c0_104, %c0_105], %307 {strides = array<i32>} : memref<16x128xf32, #tpu.memory_space<vmem>>, vector<16x128xf32>,
    %c0_i32_106 = arith.constant 0 : i32
    %313 = arith.cmpi eq, %arg0, %c0_i32_106 : i32
    %314 = arith.extui %313 : i1 to i32
    %c0_i32_107 = arith.constant 0 : i32
    %315 = arith.cmpi ne, %314, %c0_i32_107 : i32
    scf.if %315 {
      %c0_108 = arith.constant 0 : index
      %c0_109 = arith.constant 0 : index
      %316 = vector.load %arg3[%c0_108, %c0_109] : memref<16x128xf32, #tpu.memory_space<vmem>>, vector<16x128xf32>
      tpu.vector_store %arg3[%c0_108, %c0_109], %309 {strides = array<i32>} : memref<16x128xf32, #tpu.memory_space<vmem>>, vector<16x128xf32>,
    } else {
    }
    return
  }
  func.func @transform_0(%arg0: i32) -> (i32, i32, i32) {
    %c0_i32 = arith.constant 0 : i32
    %c0_i32_0 = arith.constant 0 : i32
    %c0_i32_1 = arith.constant 0 : i32
    return %arg0, %c0_i32, %c0_i32_0 : i32, i32, i32
  }
  func.func @transform_1(%arg0: i32) -> (i32, i32) {
    %c0_i32 = arith.constant 0 : i32
    %c0_i32_0 = arith.constant 0 : i32
    %c0_i32_1 = arith.constant 0 : i32
    return %c0_i32, %c0_i32_0 : i32, i32
  }
  func.func @transform_2(%arg0: i32) -> (i32, i32) {
    %c0_i32 = arith.constant 0 : i32
    %c0_i32_0 = arith.constant 0 : i32
    %c0_i32_1 = arith.constant 0 : i32
    return %c0_i32, %c0_i32_0 : i32, i32
  }
}

</mosaic_0001>

<llo_original>
// kernel: rnn_model_forward.1
$region0: #{rnn_model_forward.1}
  #allocation0 [shape = 'u32[]', space=smem, size = 0x4, offset = 0x4, fixed_abs, tag = 'smem constant byte address 0x4 - core index']
  #allocation1 [shape = 'u32[144,128]{1,0:T(1,128)}', space=vmem, size = 0x12000, scoped, tag = 'internal scratch']
  #allocation2 [shape = 'f32[16,128]{1,0:T(8,128)}', space=vmem, size = 0x2000, scoped, tag = 'scratch operand']
  #allocation3 [shape = 'f32[16,128]{1,0:T(8,128)}', space=vmem, size = 0x2000, scoped, tag = 'scratch operand']
  %s0 = inlined_call_operand.vmem [shape: bf16[8,16,512], index: 0, kind: input, shape index: {}]
  %s1 = inlined_call_operand.vmem [shape: bf16[128,512], index: 1, kind: input, shape index: {}]
  %s2 = inlined_call_operand.vmem [shape: f32[16,128], index: 2, kind: output, shape index: {}]
  %s3 = sld [smem:[#allocation0]]
  $region26: #{rnn_model_forward.1} parent=0
    _
  %s5 = ssub.s32 1, %s3
  %s6 = scalar_select 0, %s5, %s3
  // Predicated region
  $region2: #{rnn_model_forward.1} parent=0 // pred_check
    _
  $region3: #{rnn_model_forward.1} parent=0 // pred_check_branch
    %8 = sbr.rel (0) target = $region5
  $region4: #{rnn_model_forward.1} parent=0 // pred_region
    _
  $region5: #{rnn_model_forward.1} parent=0 // pred_fallthru
    _
  // Predicated region
  $region6: #{rnn_model_forward.1} parent=0 // pred_check
    _
  $region7: #{rnn_model_forward.1} parent=0 // pred_check_branch
    %10 = sbr.rel (0) target = $region9
  $region8: #{rnn_model_forward.1} parent=0 // pred_region
    _
  $region9: #{rnn_model_forward.1} parent=0 // pred_fallthru
    _
  %p12 = scmp.eq.s32.totalorder 0, 0
  // Predicated region
  $region10: #{rnn_model_forward.1} parent=0 // pred_check
    %p13 = pneg %p12
  $region11: #{rnn_model_forward.1} parent=0 // pred_check_branch
    %15 = sbr.rel (%p13) target = $region13
  $region12: #{rnn_model_forward.1} parent=0 // pred_region
    %16 = vst [vmem:[#allocation2] sm:$0xff] 0.0
    %17 = vst [vmem:[#allocation2 + $0x8] sm:$0xff] 0.0
    %18 = vst [vmem:[#allocation3] sm:$0xff] 0.0
    %19 = vst [vmem:[#allocation3 + $0x8] sm:$0xff] 0.0
  $region13: #{rnn_model_forward.1} parent=0 // pred_fallthru
    _
  %v20 = vld [vmem:[%s1] sm:$0xff]
  %v21 = vld [vmem:[%s1 + $0x8] sm:$0xff]
  %v22 = vld [vmem:[%s1 + $0x10] sm:$0xff]
  %v23 = vld [vmem:[%s1 + $0x18] sm:$0xff]
  %v24 = vld [vmem:[%s1 + $0x20] sm:$0xff]
  %v25 = vld [vmem:[%s1 + $0x28] sm:$0xff]
  %v26 = vld [vmem:[%s1 + $0x30] sm:$0xff]
  %v27 = vld [vmem:[%s1 + $0x38] sm:$0xff]
  %v28 = vld [vmem:[%s1 + $0x40] sm:$0xff]
  %v29 = vld [vmem:[%s1 + $0x48] sm:$0xff]
  %v30 = vld [vmem:[%s1 + $0x50] sm:$0xff]
  %v31 = vld [vmem:[%s1 + $0x58] sm:$0xff]
  %v32 = vld [vmem:[%s1 + $0x60] sm:$0xff]
  %v33 = vld [vmem:[%s1 + $0x68] sm:$0xff]
  %v34 = vld [vmem:[%s1 + $0x70] sm:$0xff]
  %v35 = vld [vmem:[%s1 + $0x78] sm:$0xff]
  %v36 = vld [vmem:[%s1 + $0x80] sm:$0xff]
  %v37 = vld [vmem:[%s1 + $0x88] sm:$0xff]
  %v38 = vld [vmem:[%s1 + $0x90] sm:$0xff]
  %v39 = vld [vmem:[%s1 + $0x98] sm:$0xff]
  %v40 = vld [vmem:[%s1 + $0xa0] sm:$0xff]
  %v41 = vld [vmem:[%s1 + $0xa8] sm:$0xff]
  %v42 = vld [vmem:[%s1 + $0xb0] sm:$0xff]
  %v43 = vld [vmem:[%s1 + $0xb8] sm:$0xff]
  %v44 = vld [vmem:[%s1 + $0xc0] sm:$0xff]
  %v45 = vld [vmem:[%s1 + $0xc8] sm:$0xff]
  %v46 = vld [vmem:[%s1 + $0xd0] sm:$0xff]
  %v47 = vld [vmem:[%s1 + $0xd8] sm:$0xff]
  %v48 = vld [vmem:[%s1 + $0xe0] sm:$0xff]
  %v49 = vld [vmem:[%s1 + $0xe8] sm:$0xff]
  %v50 = vld [vmem:[%s1 + $0xf0] sm:$0xff]
  %v51 = vld [vmem:[%s1 + $0xf8] sm:$0xff]
  %v52 = vld [vmem:[#allocation2] sm:$0xff]
  %v53 = vld [vmem:[#allocation2 + $0x8] sm:$0xff]
  %v54 = vld [vmem:[#allocation3] sm:$0xff]
  %v55 = vld [vmem:[#allocation3 + $0x8] sm:$0xff]
  %v56 = vpack.c.bf16 %v53, %v52
  %v57 = vld [vmem:[%s0] sm:$0xff]
  %v58 = vld [vmem:[%s0 + $0x8] sm:$0xff]
  %v59 = vld [vmem:[%s0 + $0x10] sm:$0xff]
  %v60 = vld [vmem:[%s0 + $0x18] sm:$0xff]
  %v61 = vunpack.c.l.bf16 %v57
  %v62 = vunpack.c.h.bf16 %v57
  %v63 = vunpack.c.l.bf16 %v58
  %v64 = vunpack.c.h.bf16 %v58
  %v65 = vunpack.c.l.bf16 %v59
  %v66 = vunpack.c.h.bf16 %v59
  %v67 = vunpack.c.l.bf16 %v60
  %v68 = vunpack.c.h.bf16 %v60
  %v101 = vunpack.c.l.b16 %v20
  %v102 = vunpack.c.h.b16 %v20
  %v103 = vunpack.c.l.b16 %v21
  %v104 = vunpack.c.h.b16 %v21
  %v105 = vunpack.c.l.b16 %v22
  %v106 = vunpack.c.h.b16 %v22
  %v107 = vunpack.c.l.b16 %v23
  %v108 = vunpack.c.h.b16 %v23
  %v109 = vunpack.c.l.b16 %v24
  %v110 = vunpack.c.h.b16 %v24
  %v111 = vunpack.c.l.b16 %v25
  %v112 = vunpack.c.h.b16 %v25
  %v113 = vunpack.c.l.b16 %v26
  %v114 = vunpack.c.h.b16 %v26
  %v115 = vunpack.c.l.b16 %v27
  %v116 = vunpack.c.h.b16 %v27
  %v117 = vunpack.c.l.b16 %v28
  %v118 = vunpack.c.h.b16 %v28
  %v119 = vunpack.c.l.b16 %v29
  %v120 = vunpack.c.h.b16 %v29
  %v121 = vunpack.c.l.b16 %v30
  %v122 = vunpack.c.h.b16 %v30
  %v123 = vunpack.c.l.b16 %v31
  %v124 = vunpack.c.h.b16 %v31
  %v125 = vunpack.c.l.b16 %v32
  %v126 = vunpack.c.h.b16 %v32
  %v127 = vunpack.c.l.b16 %v33
  %v128 = vunpack.c.h.b16 %v33
  %v129 = vunpack.c.l.b16 %v34
  %v130 = vunpack.c.h.b16 %v34
  %v131 = vunpack.c.l.b16 %v35
  %v132 = vunpack.c.h.b16 %v35
  %v133 = vunpack.c.l.b16 %v36
  %v134 = vunpack.c.h.b16 %v36
  %v135 = vunpack.c.l.b16 %v37
  %v136 = vunpack.c.h.b16 %v37
  %v137 = vunpack.c.l.b16 %v38
  %v138 = vunpack.c.h.b16 %v38
  %v139 = vunpack.c.l.b16 %v39
  %v140 = vunpack.c.h.b16 %v39
  %v141 = vunpack.c.l.b16 %v40
  %v142 = vunpack.c.h.b16 %v40
  %v143 = vunpack.c.l.b16 %v41
  %v144 = vunpack.c.h.b16 %v41
  %v145 = vunpack.c.l.b16 %v42
  %v146 = vunpack.c.h.b16 %v42
  %v147 = vunpack.c.l.b16 %v43
  %v148 = vunpack.c.h.b16 %v43
  %v149 = vunpack.c.l.b16 %v44
  %v150 = vunpack.c.h.b16 %v44
  %v151 = vunpack.c.l.b16 %v45
  %v152 = vunpack.c.h.b16 %v45
  %v153 = vunpack.c.l.b16 %v46
  %v154 = vunpack.c.h.b16 %v46
  %v155 = vunpack.c.l.b16 %v47
  %v156 = vunpack.c.h.b16 %v47
  %v157 = vunpack.c.l.b16 %v48
  %v158 = vunpack.c.h.b16 %v48
  %v159 = vunpack.c.l.b16 %v49
  %v160 = vunpack.c.h.b16 %v49
  %v161 = vunpack.c.l.b16 %v50
  %v162 = vunpack.c.h.b16 %v50
  %v163 = vunpack.c.l.b16 %v51
  %v164 = vunpack.c.h.b16 %v51
  %v165 = vpack.c.b16 %v105, %v101
  %v166 = vpack.c.b16 %v106, %v102
  %v167 = vpack.c.b16 %v107, %v103
  %v168 = vpack.c.b16 %v108, %v104
  %v169 = vpack.c.b16 %v113, %v109
  %v170 = vpack.c.b16 %v114, %v110
  %v171 = vpack.c.b16 %v115, %v111
  %v172 = vpack.c.b16 %v116, %v112
  %v173 = vpack.c.b16 %v121, %v117
  %v174 = vpack.c.b16 %v122, %v118
  %v175 = vpack.c.b16 %v123, %v119
  %v176 = vpack.c.b16 %v124, %v120
  %v177 = vpack.c.b16 %v129, %v125
  %v178 = vpack.c.b16 %v130, %v126
  %v179 = vpack.c.b16 %v131, %v127
  %v180 = vpack.c.b16 %v132, %v128
  %v181 = vpack.c.b16 %v137, %v133
  %v182 = vpack.c.b16 %v138, %v134
  %v183 = vpack.c.b16 %v139, %v135
  %v184 = vpack.c.b16 %v140, %v136
  %v185 = vpack.c.b16 %v145, %v141
  %v186 = vpack.c.b16 %v146, %v142
  %v187 = vpack.c.b16 %v147, %v143
  %v188 = vpack.c.b16 %v148, %v144
  %v189 = vpack.c.b16 %v153, %v149
  %v190 = vpack.c.b16 %v154, %v150
  %v191 = vpack.c.b16 %v155, %v151
  %v192 = vpack.c.b16 %v156, %v152
  %v193 = vpack.c.b16 %v161, %v157
  %v194 = vpack.c.b16 %v162, %v158
  %v195 = vpack.c.b16 %v163, %v159
  %v196 = vpack.c.b16 %v164, %v160
  %229 = vmatprep.subr.bf16.mxu0 %v194
  %230 = vmatpush1.bf16.msra.mxu0 %v193
  %231 = vmatprep.subr.bf16.mxu0 %v190
  %232 = vmatpush1.bf16.msra.mxu0 %v189
  %233 = vmatprep.subr.bf16.mxu0 %v186
  %234 = vmatpush1.bf16.msra.mxu0 %v185
  %235 = vmatprep.subr.bf16.mxu0 %v182
  %236 = vmatpush1.bf16.msra.mxu0 %v181
  %237 = vmatprep.subr.bf16.mxu0 %v178
  %238 = vmatpush1.bf16.msra.mxu0 %v177
  %239 = vmatprep.subr.bf16.mxu0 %v174
  %240 = vmatpush1.bf16.msra.mxu0 %v173
  %241 = vmatprep.subr.bf16.mxu0 %v170
  %242 = vmatpush1.bf16.msra.mxu0 %v169
  %243 = vmatprep.subr.bf16.mxu0 %v166
  %244 = vmatpush1.bf16.msra.mxu0 %v165
  %245 = vmatprep.subr.bf16.mxu0 0
  %246 = vmatpush2.bf16.msra.mxu0 0
  %247 = vmatprep.subr.bf16.mxu0 0
  %248 = vmatpush2.bf16.msra.mxu0 0
  %249 = vmatprep.subr.bf16.mxu0 0
  %250 = vmatpush2.bf16.msra.mxu0 0
  %251 = vmatprep.subr.bf16.mxu0 0
  %252 = vmatpush2.bf16.msra.mxu0 0
  %253 = vmatprep.subr.bf16.mxu0 0
  %254 = vmatpush2.bf16.msra.mxu0 0
  %255 = vmatprep.subr.bf16.mxu0 0
  %256 = vmatpush2.bf16.msra.mxu0 0
  %257 = vmatprep.subr.bf16.mxu0 0
  %258 = vmatpush2.bf16.msra.mxu0 0
  %259 = vmatprep.subr.bf16.mxu0 0
  %260 = vmatpush2.bf16.msra.mxu0 0
  %261 = vmatprep.mubr.bf16.mxu0 0
  %262 = vmatmul.mubr.bf16.gmra.mxu0 %v56
  %v263 = vpop.f32.mrf.mxu0
  %v264 = vadd.f32 0.0, %v263
  %v265 = vpop.f32.mrf.mxu0
  %v266 = vadd.f32 0.0, %v265
  %v267 = vpop.f32.mrf.mxu0
  %v268 = vadd.f32 0.0, %v267
  %v269 = vpop.f32.mrf.mxu0
  %v270 = vadd.f32 0.0, %v269
  %271 = vdwg.mxu0
  %272 = vmatprep.subr.bf16.mxu0 %v196
  %273 = vmatpush1.bf16.msra.mxu0 %v195
  %274 = vmatprep.subr.bf16.mxu0 %v192
  %275 = vmatpush1.bf16.msra.mxu0 %v191
  %276 = vmatprep.subr.bf16.mxu0 %v188
  %277 = vmatpush1.bf16.msra.mxu0 %v187
  %278 = vmatprep.subr.bf16.mxu0 %v184
  %279 = vmatpush1.bf16.msra.mxu0 %v183
  %280 = vmatprep.subr.bf16.mxu0 %v180
  %281 = vmatpush1.bf16.msra.mxu0 %v179
  %282 = vmatprep.subr.bf16.mxu0 %v176
  %283 = vmatpush1.bf16.msra.mxu0 %v175
  %284 = vmatprep.subr.bf16.mxu0 %v172
  %285 = vmatpush1.bf16.msra.mxu0 %v171
  %286 = vmatprep.subr.bf16.mxu0 %v168
  %287 = vmatpush1.bf16.msra.mxu0 %v167
  %288 = vmatprep.subr.bf16.mxu0 0
  %289 = vmatpush2.bf16.msra.mxu0 0
  %290 = vmatprep.subr.bf16.mxu0 0
  %291 = vmatpush2.bf16.msra.mxu0 0
  %292 = vmatprep.subr.bf16.mxu0 0
  %293 = vmatpush2.bf16.msra.mxu0 0
  %294 = vmatprep.subr.bf16.mxu0 0
  %295 = vmatpush2.bf16.msra.mxu0 0
  %296 = vmatprep.subr.bf16.mxu0 0
  %297 = vmatpush2.bf16.msra.mxu0 0
  %298 = vmatprep.subr.bf16.mxu0 0
  %299 = vmatpush2.bf16.msra.mxu0 0
  %300 = vmatprep.subr.bf16.mxu0 0
  %301 = vmatpush2.bf16.msra.mxu0 0
  %302 = vmatprep.subr.bf16.mxu0 0
  %303 = vmatpush2.bf16.msra.mxu0 0
  %304 = vmatprep.mubr.bf16.mxu0 0
  %305 = vmatmul.mubr.bf16.gmra.mxu0 %v56
  %v306 = vpop.f32.mrf.mxu0
  %v307 = vadd.f32 0.0, %v306
  %v308 = vpop.f32.mrf.mxu0
  %v309 = vadd.f32 0.0, %v308
  %v310 = vpop.f32.mrf.mxu0
  %v311 = vadd.f32 0.0, %v310
  %v312 = vpop.f32.mrf.mxu0
  %v313 = vadd.f32 0.0, %v312
  %314 = vdwg.mxu0
  %v315 = vadd.f32 %v61, %v264
  %v316 = vadd.f32 %v62, %v266
  %v317 = vadd.f32 %v63, %v307
  %v318 = vadd.f32 %v64, %v309
  %v319 = vadd.f32 %v65, %v268
  %v320 = vadd.f32 %v66, %v270
  %v321 = vadd.f32 %v67, %v311
  %v322 = vadd.f32 %v68, %v313
  %v323 = vmul.f32 %v315, 0.5
  %v324 = vmul.f32 %v319, 0.5
  %v325 = vtanh.pop %v323
  %v326 = vtanh.pop %v324
  %v327 = vadd.f32 %v325, 1.0
  %v328 = vadd.f32 %v326, 1.0
  %v329 = vmul.f32 %v327, 0.5
  %v330 = vmul.f32 %v328, 0.5
  %v331 = vmul.f32 %v316, 0.5
  %v332 = vmul.f32 %v320, 0.5
  %v333 = vtanh.pop %v331
  %v334 = vtanh.pop %v332
  %v335 = vadd.f32 %v333, 1.0
  %v336 = vadd.f32 %v334, 1.0
  %v337 = vmul.f32 %v335, 0.5
  %v338 = vmul.f32 %v336, 0.5
  %v339 = vtanh.pop %v317
  %v340 = vtanh.pop %v321
  %v341 = vmul.f32 %v318, 0.5
  %v342 = vmul.f32 %v322, 0.5
  %v343 = vtanh.pop %v341
  %v344 = vtanh.pop %v342
  %v345 = vadd.f32 %v343, 1.0
  %v346 = vadd.f32 %v344, 1.0
  %v347 = vmul.f32 %v345, 0.5
  %v348 = vmul.f32 %v346, 0.5
  %v349 = vmul.f32 %v337, %v54
  %v350 = vmul.f32 %v338, %v55
  %v351 = vmul.f32 %v329, %v339
  %v352 = vmul.f32 %v330, %v340
  %v353 = vadd.f32 %v349, %v351
  %v354 = vadd.f32 %v350, %v352
  %v355 = vtanh.pop %v353
  %v356 = vtanh.pop %v354
  %v357 = vmul.f32 %v347, %v355
  %v358 = vmul.f32 %v348, %v356
  %v359 = vpack.c.bf16 %v358, %v357
  %s360 = scalar_lea.vmem %s0, 32
  %v361 = vld [vmem:[%s360] sm:$0xff]
  %v362 = vld [vmem:[%s360 + $0x8] sm:$0xff]
  %v363 = vld [vmem:[%s360 + $0x10] sm:$0xff]
  %v364 = vld [vmem:[%s360 + $0x18] sm:$0xff]
  %v365 = vunpack.c.l.bf16 %v361
  %v366 = vunpack.c.h.bf16 %v361
  %v367 = vunpack.c.l.bf16 %v362
  %v368 = vunpack.c.h.bf16 %v362
  %v369 = vunpack.c.l.bf16 %v363
  %v370 = vunpack.c.h.bf16 %v363
  %v371 = vunpack.c.l.bf16 %v364
  %v372 = vunpack.c.h.bf16 %v364
  %373 = vmatprep.subr.bf16.mxu0 %v194
  %374 = vmatpush1.bf16.msra.mxu0 %v193
  %375 = vmatprep.subr.bf16.mxu0 %v190
  %376 = vmatpush1.bf16.msra.mxu0 %v189
  %377 = vmatprep.subr.bf16.mxu0 %v186
  %378 = vmatpush1.bf16.msra.mxu0 %v185
  %379 = vmatprep.subr.bf16.mxu0 %v182
  %380 = vmatpush1.bf16.msra.mxu0 %v181
  %381 = vmatprep.subr.bf16.mxu0 %v178
  %382 = vmatpush1.bf16.msra.mxu0 %v177
  %383 = vmatprep.subr.bf16.mxu0 %v174
  %384 = vmatpush1.bf16.msra.mxu0 %v173
  %385 = vmatprep.subr.bf16.mxu0 %v170
  %386 = vmatpush1.bf16.msra.mxu0 %v169
  %387 = vmatprep.subr.bf16.mxu0 %v166
  %388 = vmatpush1.bf16.msra.mxu0 %v165
  %389 = vmatprep.subr.bf16.mxu0 0
  %390 = vmatpush2.bf16.msra.mxu0 0
  %391 = vmatprep.subr.bf16.mxu0 0
  %392 = vmatpush2.bf16.msra.mxu0 0
  %393 = vmatprep.subr.bf16.mxu0 0
  %394 = vmatpush2.bf16.msra.mxu0 0
  %395 = vmatprep.subr.bf16.mxu0 0
  %396 = vmatpush2.bf16.msra.mxu0 0
  %397 = vmatprep.subr.bf16.mxu0 0
  %398 = vmatpush2.bf16.msra.mxu0 0
  %399 = vmatprep.subr.bf16.mxu0 0
  %400 = vmatpush2.bf16.msra.mxu0 0
  %401 = vmatprep.subr.bf16.mxu0 0
  %402 = vmatpush2.bf16.msra.mxu0 0
  %403 = vmatprep.subr.bf16.mxu0 0
  %404 = vmatpush2.bf16.msra.mxu0 0
  %405 = vmatprep.mubr.bf16.mxu0 0
  %406 = vmatmul.mubr.bf16.gmra.mxu0 %v359
  %v407 = vpop.f32.mrf.mxu0
  %v408 = vadd.f32 0.0, %v407
  %v409 = vpop.f32.mrf.mxu0
  %v410 = vadd.f32 0.0, %v409
  %v411 = vpop.f32.mrf.mxu0
  %v412 = vadd.f32 0.0, %v411
  %v413 = vpop.f32.mrf.mxu0
  %v414 = vadd.f32 0.0, %v413
  %415 = vdwg.mxu0
  %416 = vmatprep.subr.bf16.mxu0 %v196
  %417 = vmatpush1.bf16.msra.mxu0 %v195
  %418 = vmatprep.subr.bf16.mxu0 %v192
  %419 = vmatpush1.bf16.msra.mxu0 %v191
  %420 = vmatprep.subr.bf16.mxu0 %v188
  %421 = vmatpush1.bf16.msra.mxu0 %v187
  %422 = vmatprep.subr.bf16.mxu0 %v184
  %423 = vmatpush1.bf16.msra.mxu0 %v183
  %424 = vmatprep.subr.bf16.mxu0 %v180
  %425 = vmatpush1.bf16.msra.mxu0 %v179
  %426 = vmatprep.subr.bf16.mxu0 %v176
  %427 = vmatpush1.bf16.msra.mxu0 %v175
  %428 = vmatprep.subr.bf16.mxu0 %v172
  %429 = vmatpush1.bf16.msra.mxu0 %v171
  %430 = vmatprep.subr.bf16.mxu0 %v168
  %431 = vmatpush1.bf16.msra.mxu0 %v167
  %432 = vmatprep.subr.bf16.mxu0 0
  %433 = vmatpush2.bf16.msra.mxu0 0
  %434 = vmatprep.subr.bf16.mxu0 0
  %435 = vmatpush2.bf16.msra.mxu0 0
  %436 = vmatprep.subr.bf16.mxu0 0
  %437 = vmatpush2.bf16.msra.mxu0 0
  %438 = vmatprep.subr.bf16.mxu0 0
  %439 = vmatpush2.bf16.msra.mxu0 0
  %440 = vmatprep.subr.bf16.mxu0 0
  %441 = vmatpush2.bf16.msra.mxu0 0
  %442 = vmatprep.subr.bf16.mxu0 0
  %443 = vmatpush2.bf16.msra.mxu0 0
  %444 = vmatprep.subr.bf16.mxu0 0
  %445 = vmatpush2.bf16.msra.mxu0 0
  %446 = vmatprep.subr.bf16.mxu0 0
  %447 = vmatpush2.bf16.msra.mxu0 0
  %448 = vmatprep.mubr.bf16.mxu0 0
  %449 = vmatmul.mubr.bf16.gmra.mxu0 %v359
  %v450 = vpop.f32.mrf.mxu0
  %v451 = vadd.f32 0.0, %v450
  %v452 = vpop.f32.mrf.mxu0
  %v453 = vadd.f32 0.0, %v452
  %v454 = vpop.f32.mrf.mxu0
  %v455 = vadd.f32 0.0, %v454
  %v456 = vpop.f32.mrf.mxu0
  %v457 = vadd.f32 0.0, %v456
  %458 = vdwg.mxu0
  %v459 = vadd.f32 %v365, %v408
  %v460 = vadd.f32 %v366, %v410
  %v461 = vadd.f32 %v367, %v451
  %v462 = vadd.f32 %v368, %v453
  %v463 = vadd.f32 %v369, %v412
  %v464 = vadd.f32 %v370, %v414
  %v465 = vadd.f32 %v371, %v455
  %v466 = vadd.f32 %v372, %v457
  %v467 = vmul.f32 %v459, 0.5
  %v468 = vmul.f32 %v463, 0.5
  %v469 = vtanh.pop %v467
  %v470 = vtanh.pop %v468
  %v471 = vadd.f32 %v469, 1.0
  %v472 = vadd.f32 %v470, 1.0
  %v473 = vmul.f32 %v471, 0.5
  %v474 = vmul.f32 %v472, 0.5
  %v475 = vmul.f32 %v460, 0.5
  %v476 = vmul.f32 %v464, 0.5
  %v477 = vtanh.pop %v475
  %v478 = vtanh.pop %v476
  %v479 = vadd.f32 %v477, 1.0
  %v480 = vadd.f32 %v478, 1.0
  %v481 = vmul.f32 %v479, 0.5
  %v482 = vmul.f32 %v480, 0.5
  %v483 = vtanh.pop %v461
  %v484 = vtanh.pop %v465
  %v485 = vmul.f32 %v462, 0.5
  %v486 = vmul.f32 %v466, 0.5
  %v487 = vtanh.pop %v485
  %v488 = vtanh.pop %v486
  %v489 = vadd.f32 %v487, 1.0
  %v490 = vadd.f32 %v488, 1.0
  %v491 = vmul.f32 %v489, 0.5
  %v492 = vmul.f32 %v490, 0.5
  %v493 = vmul.f32 %v481, %v353
  %v494 = vmul.f32 %v482, %v354
  %v495 = vmul.f32 %v473, %v483
  %v496 = vmul.f32 %v474, %v484
  %v497 = vadd.f32 %v493, %v495
  %v498 = vadd.f32 %v494, %v496
  %v499 = vtanh.pop %v497
  %v500 = vtanh.pop %v498
  %v501 = vmul.f32 %v491, %v499
  %v502 = vmul.f32 %v492, %v500
  %v503 = vpack.c.bf16 %v502, %v501
  %s504 = scalar_lea.vmem %s0, 64
  %v505 = vld [vmem:[%s504] sm:$0xff]
  %v506 = vld [vmem:[%s504 + $0x8] sm:$0xff]
  %v507 = vld [vmem:[%s504 + $0x10] sm:$0xff]
  %v508 = vld [vmem:[%s504 + $0x18] sm:$0xff]
  %v509 = vunpack.c.l.bf16 %v505
  %v510 = vunpack.c.h.bf16 %v505
  %v511 = vunpack.c.l.bf16 %v506
  %v512 = vunpack.c.h.bf16 %v506
  %v513 = vunpack.c.l.bf16 %v507
  %v514 = vunpack.c.h.bf16 %v507
  %v515 = vunpack.c.l.bf16 %v508
  %v516 = vunpack.c.h.bf16 %v508
  %517 = vmatprep.subr.bf16.mxu0 %v194
  %518 = vmatpush1.bf16.msra.mxu0 %v193
  %519 = vmatprep.subr.bf16.mxu0 %v190
  %520 = vmatpush1.bf16.msra.mxu0 %v189
  %521 = vmatprep.subr.bf16.mxu0 %v186
  %522 = vmatpush1.bf16.msra.mxu0 %v185
  %523 = vmatprep.subr.bf16.mxu0 %v182
  %524 = vmatpush1.bf16.msra.mxu0 %v181
  %525 = vmatprep.subr.bf16.mxu0 %v178
  %526 = vmatpush1.bf16.msra.mxu0 %v177
  %527 = vmatprep.subr.bf16.mxu0 %v174
  %528 = vmatpush1.bf16.msra.mxu0 %v173
  %529 = vmatprep.subr.bf16.mxu0 %v170
  %530 = vmatpush1.bf16.msra.mxu0 %v169
  %531 = vmatprep.subr.bf16.mxu0 %v166
  %532 = vmatpush1.bf16.msra.mxu0 %v165
  %533 = vmatprep.subr.bf16.mxu0 0
  %534 = vmatpush2.bf16.msra.mxu0 0
  %535 = vmatprep.subr.bf16.mxu0 0
  %536 = vmatpush2.bf16.msra.mxu0 0
  %537 = vmatprep.subr.bf16.mxu0 0
  %538 = vmatpush2.bf16.msra.mxu0 0
  %539 = vmatprep.subr.bf16.mxu0 0
  %540 = vmatpush2.bf16.msra.mxu0 0
  %541 = vmatprep.subr.bf16.mxu0 0
  %542 = vmatpush2.bf16.msra.mxu0 0
  %543 = vmatprep.subr.bf16.mxu0 0
  %544 = vmatpush2.bf16.msra.mxu0 0
  %545 = vmatprep.subr.bf16.mxu0 0
  %546 = vmatpush2.bf16.msra.mxu0 0
  %547 = vmatprep.subr.bf16.mxu0 0
  %548 = vmatpush2.bf16.msra.mxu0 0
  %549 = vmatprep.mubr.bf16.mxu0 0
  %550 = vmatmul.mubr.bf16.gmra.mxu0 %v503
  %v551 = vpop.f32.mrf.mxu0
  %v552 = vadd.f32 0.0, %v551
  %v553 = vpop.f32.mrf.mxu0
  %v554 = vadd.f32 0.0, %v553
  %v555 = vpop.f32.mrf.mxu0
  %v556 = vadd.f32 0.0, %v555
  %v557 = vpop.f32.mrf.mxu0
  %v558 = vadd.f32 0.0, %v557
  %559 = vdwg.mxu0
  %560 = vmatprep.subr.bf16.mxu0 %v196
  %561 = vmatpush1.bf16.msra.mxu0 %v195
  %562 = vmatprep.subr.bf16.mxu0 %v192
  %563 = vmatpush1.bf16.msra.mxu0 %v191
  %564 = vmatprep.subr.bf16.mxu0 %v188
  %565 = vmatpush1.bf16.msra.mxu0 %v187
  %566 = vmatprep.subr.bf16.mxu0 %v184
  %567 = vmatpush1.bf16.msra.mxu0 %v183
  %568 = vmatprep.subr.bf16.mxu0 %v180
  %569 = vmatpush1.bf16.msra.mxu0 %v179
  %570 = vmatprep.subr.bf16.mxu0 %v176
  %571 = vmatpush1.bf16.msra.mxu0 %v175
  %572 = vmatprep.subr.bf16.mxu0 %v172
  %573 = vmatpush1.bf16.msra.mxu0 %v171
  %574 = vmatprep.subr.bf16.mxu0 %v168
  %575 = vmatpush1.bf16.msra.mxu0 %v167
  %576 = vmatprep.subr.bf16.mxu0 0
  %577 = vmatpush2.bf16.msra.mxu0 0
  %578 = vmatprep.subr.bf16.mxu0 0
  %579 = vmatpush2.bf16.msra.mxu0 0
  %580 = vmatprep.subr.bf16.mxu0 0
  %581 = vmatpush2.bf16.msra.mxu0 0
  %582 = vmatprep.subr.bf16.mxu0 0
  %583 = vmatpush2.bf16.msra.mxu0 0
  %584 = vmatprep.subr.bf16.mxu0 0
  %585 = vmatpush2.bf16.msra.mxu0 0
  %586 = vmatprep.subr.bf16.mxu0 0
  %587 = vmatpush2.bf16.msra.mxu0 0
  %588 = vmatprep.subr.bf16.mxu0 0
  %589 = vmatpush2.bf16.msra.mxu0 0
  %590 = vmatprep.subr.bf16.mxu0 0
  %591 = vmatpush2.bf16.msra.mxu0 0
  %592 = vmatprep.mubr.bf16.mxu0 0
  %593 = vmatmul.mubr.bf16.gmra.mxu0 %v503
  %v594 = vpop.f32.mrf.mxu0
  %v595 = vadd.f32 0.0, %v594
  %v596 = vpop.f32.mrf.mxu0
  %v597 = vadd.f32 0.0, %v596
  %v598 = vpop.f32.mrf.mxu0
  %v599 = vadd.f32 0.0, %v598
  %v600 = vpop.f32.mrf.mxu0
  %v601 = vadd.f32 0.0, %v600
  %602 = vdwg.mxu0
  %v603 = vadd.f32 %v509, %v552
  %v604 = vadd.f32 %v510, %v554
  %v605 = vadd.f32 %v511, %v595
  %v606 = vadd.f32 %v512, %v597
  %v607 = vadd.f32 %v513, %v556
  %v608 = vadd.f32 %v514, %v558
  %v609 = vadd.f32 %v515, %v599
  %v610 = vadd.f32 %v516, %v601
  %v611 = vmul.f32 %v603, 0.5
  %v612 = vmul.f32 %v607, 0.5
  %v613 = vtanh.pop %v611
  %v614 = vtanh.pop %v612
  %v615 = vadd.f32 %v613, 1.0
  %v616 = vadd.f32 %v614, 1.0
  %v617 = vmul.f32 %v615, 0.5
  %v618 = vmul.f32 %v616, 0.5
  %v619 = vmul.f32 %v604, 0.5
  %v620 = vmul.f32 %v608, 0.5
  %v621 = vtanh.pop %v619
  %v622 = vtanh.pop %v620
  %v623 = vadd.f32 %v621, 1.0
  %v624 = vadd.f32 %v622, 1.0
  %v625 = vmul.f32 %v623, 0.5
  %v626 = vmul.f32 %v624, 0.5
  %v627 = vtanh.pop %v605
  %v628 = vtanh.pop %v609
  %v629 = vmul.f32 %v606, 0.5
  %v630 = vmul.f32 %v610, 0.5
  %v631 = vtanh.pop %v629
  %v632 = vtanh.pop %v630
  %v633 = vadd.f32 %v631, 1.0
  %v634 = vadd.f32 %v632, 1.0
  %v635 = vmul.f32 %v633, 0.5
  %v636 = vmul.f32 %v634, 0.5
  %v637 = vmul.f32 %v625, %v497
  %v638 = vmul.f32 %v626, %v498
  %v639 = vmul.f32 %v617, %v627
  %v640 = vmul.f32 %v618, %v628
  %v641 = vadd.f32 %v637, %v639
  %v642 = vadd.f32 %v638, %v640
  %v643 = vtanh.pop %v641
  %v644 = vtanh.pop %v642
  %v645 = vmul.f32 %v635, %v643
  %v646 = vmul.f32 %v636, %v644
  %v647 = vpack.c.bf16 %v646, %v645
  %s648 = scalar_lea.vmem %s0, 96
  %v649 = vld [vmem:[%s648] sm:$0xff]
  %v650 = vld [vmem:[%s648 + $0x8] sm:$0xff]
  %v651 = vld [vmem:[%s648 + $0x10] sm:$0xff]
  %v652 = vld [vmem:[%s648 + $0x18] sm:$0xff]
  %v653 = vunpack.c.l.bf16 %v649
  %v654 = vunpack.c.h.bf16 %v649
  %v655 = vunpack.c.l.bf16 %v650
  %v656 = vunpack.c.h.bf16 %v650
  %v657 = vunpack.c.l.bf16 %v651
  %v658 = vunpack.c.h.bf16 %v651
  %v659 = vunpack.c.l.bf16 %v652
  %v660 = vunpack.c.h.bf16 %v652
  %661 = vmatprep.subr.bf16.mxu0 %v194
  %662 = vmatpush1.bf16.msra.mxu0 %v193
  %663 = vmatprep.subr.bf16.mxu0 %v190
  %664 = vmatpush1.bf16.msra.mxu0 %v189
  %665 = vmatprep.subr.bf16.mxu0 %v186
  %666 = vmatpush1.bf16.msra.mxu0 %v185
  %667 = vmatprep.subr.bf16.mxu0 %v182
  %668 = vmatpush1.bf16.msra.mxu0 %v181
  %669 = vmatprep.subr.bf16.mxu0 %v178
  %670 = vmatpush1.bf16.msra.mxu0 %v177
  %671 = vmatprep.subr.bf16.mxu0 %v174
  %672 = vmatpush1.bf16.msra.mxu0 %v173
  %673 = vmatprep.subr.bf16.mxu0 %v170
  %674 = vmatpush1.bf16.msra.mxu0 %v169
  %675 = vmatprep.subr.bf16.mxu0 %v166
  %676 = vmatpush1.bf16.msra.mxu0 %v165
  %677 = vmatprep.subr.bf16.mxu0 0
  %678 = vmatpush2.bf16.msra.mxu0 0
  %679 = vmatprep.subr.bf16.mxu0 0
  %680 = vmatpush2.bf16.msra.mxu0 0
  %681 = vmatprep.subr.bf16.mxu0 0
  %682 = vmatpush2.bf16.msra.mxu0 0
  %683 = vmatprep.subr.bf16.mxu0 0
  %684 = vmatpush2.bf16.msra.mxu0 0
  %685 = vmatprep.subr.bf16.mxu0 0
  %686 = vmatpush2.bf16.msra.mxu0 0
  %687 = vmatprep.subr.bf16.mxu0 0
  %688 = vmatpush2.bf16.msra.mxu0 0
  %689 = vmatprep.subr.bf16.mxu0 0
  %690 = vmatpush2.bf16.msra.mxu0 0
  %691 = vmatprep.subr.bf16.mxu0 0
  %692 = vmatpush2.bf16.msra.mxu0 0
  %693 = vmatprep.mubr.bf16.mxu0 0
  %694 = vmatmul.mubr.bf16.gmra.mxu0 %v647
  %v695 = vpop.f32.mrf.mxu0
  %v696 = vadd.f32 0.0, %v695
  %v697 = vpop.f32.mrf.mxu0
  %v698 = vadd.f32 0.0, %v697
  %v699 = vpop.f32.mrf.mxu0
  %v700 = vadd.f32 0.0, %v699
  %v701 = vpop.f32.mrf.mxu0
  %v702 = vadd.f32 0.0, %v701
  %703 = vdwg.mxu0
  %704 = vmatprep.subr.bf16.mxu0 %v196
  %705 = vmatpush1.bf16.msra.mxu0 %v195
  %706 = vmatprep.subr.bf16.mxu0 %v192
  %707 = vmatpush1.bf16.msra.mxu0 %v191
  %708 = vmatprep.subr.bf16.mxu0 %v188
  %709 = vmatpush1.bf16.msra.mxu0 %v187
  %710 = vmatprep.subr.bf16.mxu0 %v184
  %711 = vmatpush1.bf16.msra.mxu0 %v183
  %712 = vmatprep.subr.bf16.mxu0 %v180
  %713 = vmatpush1.bf16.msra.mxu0 %v179
  %714 = vmatprep.subr.bf16.mxu0 %v176
  %715 = vmatpush1.bf16.msra.mxu0 %v175
  %716 = vmatprep.subr.bf16.mxu0 %v172
  %717 = vmatpush1.bf16.msra.mxu0 %v171
  %718 = vmatprep.subr.bf16.mxu0 %v168
  %719 = vmatpush1.bf16.msra.mxu0 %v167
  %720 = vmatprep.subr.bf16.mxu0 0
  %721 = vmatpush2.bf16.msra.mxu0 0
  %722 = vmatprep.subr.bf16.mxu0 0
  %723 = vmatpush2.bf16.msra.mxu0 0
  %724 = vmatprep.subr.bf16.mxu0 0
  %725 = vmatpush2.bf16.msra.mxu0 0
  %726 = vmatprep.subr.bf16.mxu0 0
  %727 = vmatpush2.bf16.msra.mxu0 0
  %728 = vmatprep.subr.bf16.mxu0 0
  %729 = vmatpush2.bf16.msra.mxu0 0
  %730 = vmatprep.subr.bf16.mxu0 0
  %731 = vmatpush2.bf16.msra.mxu0 0
  %732 = vmatprep.subr.bf16.mxu0 0
  %733 = vmatpush2.bf16.msra.mxu0 0
  %734 = vmatprep.subr.bf16.mxu0 0
  %735 = vmatpush2.bf16.msra.mxu0 0
  %736 = vmatprep.mubr.bf16.mxu0 0
  %737 = vmatmul.mubr.bf16.gmra.mxu0 %v647
  %v738 = vpop.f32.mrf.mxu0
  %v739 = vadd.f32 0.0, %v738
  %v740 = vpop.f32.mrf.mxu0
  %v741 = vadd.f32 0.0, %v740
  %v742 = vpop.f32.mrf.mxu0
  %v743 = vadd.f32 0.0, %v742
  %v744 = vpop.f32.mrf.mxu0
  %v745 = vadd.f32 0.0, %v744
  %746 = vdwg.mxu0
  %v747 = vadd.f32 %v653, %v696
  %v748 = vadd.f32 %v654, %v698
  %v749 = vadd.f32 %v655, %v739
  %v750 = vadd.f32 %v656, %v741
  %v751 = vadd.f32 %v657, %v700
  %v752 = vadd.f32 %v658, %v702
  %v753 = vadd.f32 %v659, %v743
  %v754 = vadd.f32 %v660, %v745
  %v755 = vmul.f32 %v747, 0.5
  %v756 = vmul.f32 %v751, 0.5
  %v757 = vtanh.pop %v755
  %v758 = vtanh.pop %v756
  %v759 = vadd.f32 %v757, 1.0
  %v760 = vadd.f32 %v758, 1.0
  %v761 = vmul.f32 %v759, 0.5
  %v762 = vmul.f32 %v760, 0.5
  %v763 = vmul.f32 %v748, 0.5
  %v764 = vmul.f32 %v752, 0.5
  %v765 = vtanh.pop %v763
  %v766 = vtanh.pop %v764
  %v767 = vadd.f32 %v765, 1.0
  %v768 = vadd.f32 %v766, 1.0
  %v769 = vmul.f32 %v767, 0.5
  %v770 = vmul.f32 %v768, 0.5
  %v771 = vtanh.pop %v749
  %v772 = vtanh.pop %v753
  %v773 = vmul.f32 %v750, 0.5
  %v774 = vmul.f32 %v754, 0.5
  %v775 = vtanh.pop %v773
  %v776 = vtanh.pop %v774
  %v777 = vadd.f32 %v775, 1.0
  %v778 = vadd.f32 %v776, 1.0
  %v779 = vmul.f32 %v777, 0.5
  %v780 = vmul.f32 %v778, 0.5
  %v781 = vmul.f32 %v769, %v641
  %v782 = vmul.f32 %v770, %v642
  %v783 = vmul.f32 %v761, %v771
  %v784 = vmul.f32 %v762, %v772
  %v785 = vadd.f32 %v781, %v783
  %v786 = vadd.f32 %v782, %v784
  %v787 = vtanh.pop %v785
  %v788 = vtanh.pop %v786
  %v789 = vmul.f32 %v779, %v787
  %v790 = vmul.f32 %v780, %v788
  %v791 = vpack.c.bf16 %v790, %v789
  %s792 = scalar_lea.vmem %s0, 128
  %v793 = vld [vmem:[%s792] sm:$0xff]
  %v794 = vld [vmem:[%s792 + $0x8] sm:$0xff]
  %v795 = vld [vmem:[%s792 + $0x10] sm:$0xff]
  %v796 = vld [vmem:[%s792 + $0x18] sm:$0xff]
  %v797 = vunpack.c.l.bf16 %v793
  %v798 = vunpack.c.h.bf16 %v793
  %v799 = vunpack.c.l.bf16 %v794
  %v800 = vunpack.c.h.bf16 %v794
  %v801 = vunpack.c.l.bf16 %v795
  %v802 = vunpack.c.h.bf16 %v795
  %v803 = vunpack.c.l.bf16 %v796
  %v804 = vunpack.c.h.bf16 %v796
  %805 = vmatprep.subr.bf16.mxu0 %v194
  %806 = vmatpush1.bf16.msra.mxu0 %v193
  %807 = vmatprep.subr.bf16.mxu0 %v190
  %808 = vmatpush1.bf16.msra.mxu0 %v189
  %809 = vmatprep.subr.bf16.mxu0 %v186
  %810 = vmatpush1.bf16.msra.mxu0 %v185
  %811 = vmatprep.subr.bf16.mxu0 %v182
  %812 = vmatpush1.bf16.msra.mxu0 %v181
  %813 = vmatprep.subr.bf16.mxu0 %v178
  %814 = vmatpush1.bf16.msra.mxu0 %v177
  %815 = vmatprep.subr.bf16.mxu0 %v174
  %816 = vmatpush1.bf16.msra.mxu0 %v173
  %817 = vmatprep.subr.bf16.mxu0 %v170
  %818 = vmatpush1.bf16.msra.mxu0 %v169
  %819 = vmatprep.subr.bf16.mxu0 %v166
  %820 = vmatpush1.bf16.msra.mxu0 %v165
  %821 = vmatprep.subr.bf16.mxu0 0
  %822 = vmatpush2.bf16.msra.mxu0 0
  %823 = vmatprep.subr.bf16.mxu0 0
  %824 = vmatpush2.bf16.msra.mxu0 0
  %825 = vmatprep.subr.bf16.mxu0 0
  %826 = vmatpush2.bf16.msra.mxu0 0
  %827 = vmatprep.subr.bf16.mxu0 0
  %828 = vmatpush2.bf16.msra.mxu0 0
  %829 = vmatprep.subr.bf16.mxu0 0
  %830 = vmatpush2.bf16.msra.mxu0 0
  %831 = vmatprep.subr.bf16.mxu0 0
  %832 = vmatpush2.bf16.msra.mxu0 0
  %833 = vmatprep.subr.bf16.mxu0 0
  %834 = vmatpush2.bf16.msra.mxu0 0
  %835 = vmatprep.subr.bf16.mxu0 0
  %836 = vmatpush2.bf16.msra.mxu0 0
  %837 = vmatprep.mubr.bf16.mxu0 0
  %838 = vmatmul.mubr.bf16.gmra.mxu0 %v791
  %v839 = vpop.f32.mrf.mxu0
  %v840 = vadd.f32 0.0, %v839
  %v841 = vpop.f32.mrf.mxu0
  %v842 = vadd.f32 0.0, %v841
  %v843 = vpop.f32.mrf.mxu0
  %v844 = vadd.f32 0.0, %v843
  %v845 = vpop.f32.mrf.mxu0
  %v846 = vadd.f32 0.0, %v845
  %847 = vdwg.mxu0
  %848 = vmatprep.subr.bf16.mxu0 %v196
  %849 = vmatpush1.bf16.msra.mxu0 %v195
  %850 = vmatprep.subr.bf16.mxu0 %v192
  %851 = vmatpush1.bf16.msra.mxu0 %v191
  %852 = vmatprep.subr.bf16.mxu0 %v188
  %853 = vmatpush1.bf16.msra.mxu0 %v187
  %854 = vmatprep.subr.bf16.mxu0 %v184
  %855 = vmatpush1.bf16.msra.mxu0 %v183
  %856 = vmatprep.subr.bf16.mxu0 %v180
  %857 = vmatpush1.bf16.msra.mxu0 %v179
  %858 = vmatprep.subr.bf16.mxu0 %v176
  %859 = vmatpush1.bf16.msra.mxu0 %v175
  %860 = vmatprep.subr.bf16.mxu0 %v172
  %861 = vmatpush1.bf16.msra.mxu0 %v171
  %862 = vmatprep.subr.bf16.mxu0 %v168
  %863 = vmatpush1.bf16.msra.mxu0 %v167
  %864 = vmatprep.subr.bf16.mxu0 0
  %865 = vmatpush2.bf16.msra.mxu0 0
  %866 = vmatprep.subr.bf16.mxu0 0
  %867 = vmatpush2.bf16.msra.mxu0 0
  %868 = vmatprep.subr.bf16.mxu0 0
  %869 = vmatpush2.bf16.msra.mxu0 0
  %870 = vmatprep.subr.bf16.mxu0 0
  %871 = vmatpush2.bf16.msra.mxu0 0
  %872 = vmatprep.subr.bf16.mxu0 0
  %873 = vmatpush2.bf16.msra.mxu0 0
  %874 = vmatprep.subr.bf16.mxu0 0
  %875 = vmatpush2.bf16.msra.mxu0 0
  %876 = vmatprep.subr.bf16.mxu0 0
  %877 = vmatpush2.bf16.msra.mxu0 0
  %878 = vmatprep.subr.bf16.mxu0 0
  %879 = vmatpush2.bf16.msra.mxu0 0
  %880 = vmatprep.mubr.bf16.mxu0 0
  %881 = vmatmul.mubr.bf16.gmra.mxu0 %v791
  %v882 = vpop.f32.mrf.mxu0
  %v883 = vadd.f32 0.0, %v882
  %v884 = vpop.f32.mrf.mxu0
  %v885 = vadd.f32 0.0, %v884
  %v886 = vpop.f32.mrf.mxu0
  %v887 = vadd.f32 0.0, %v886
  %v888 = vpop.f32.mrf.mxu0
  %v889 = vadd.f32 0.0, %v888
  %890 = vdwg.mxu0
  %v891 = vadd.f32 %v797, %v840
  %v892 = vadd.f32 %v798, %v842
  %v893 = vadd.f32 %v799, %v883
  %v894 = vadd.f32 %v800, %v885
  %v895 = vadd.f32 %v801, %v844
  %v896 = vadd.f32 %v802, %v846
  %v897 = vadd.f32 %v803, %v887
  %v898 = vadd.f32 %v804, %v889
  %v899 = vmul.f32 %v891, 0.5
  %v900 = vmul.f32 %v895, 0.5
  %v901 = vtanh.pop %v899
  %v902 = vtanh.pop %v900
  %v903 = vadd.f32 %v901, 1.0
  %v904 = vadd.f32 %v902, 1.0
  %v905 = vmul.f32 %v903, 0.5
  %v906 = vmul.f32 %v904, 0.5
  %v907 = vmul.f32 %v892, 0.5
  %v908 = vmul.f32 %v896, 0.5
  %v909 = vtanh.pop %v907
  %v910 = vtanh.pop %v908
  %v911 = vadd.f32 %v909, 1.0
  %v912 = vadd.f32 %v910, 1.0
  %v913 = vmul.f32 %v911, 0.5
  %v914 = vmul.f32 %v912, 0.5
  %v915 = vtanh.pop %v893
  %v916 = vtanh.pop %v897
  %v917 = vmul.f32 %v894, 0.5
  %v918 = vmul.f32 %v898, 0.5
  %v919 = vtanh.pop %v917
  %v920 = vtanh.pop %v918
  %v921 = vadd.f32 %v919, 1.0
  %v922 = vadd.f32 %v920, 1.0
  %v923 = vmul.f32 %v921, 0.5
  %v924 = vmul.f32 %v922, 0.5
  %v925 = vmul.f32 %v913, %v785
  %v926 = vmul.f32 %v914, %v786
  %v927 = vmul.f32 %v905, %v915
  %v928 = vmul.f32 %v906, %v916
  %v929 = vadd.f32 %v925, %v927
  %v930 = vadd.f32 %v926, %v928
  %v931 = vtanh.pop %v929
  %v932 = vtanh.pop %v930
  %v933 = vmul.f32 %v923, %v931
  %v934 = vmul.f32 %v924, %v932
  %v935 = vpack.c.bf16 %v934, %v933
  %s936 = scalar_lea.vmem %s0, 160
  %v937 = vld [vmem:[%s936] sm:$0xff]
  %v938 = vld [vmem:[%s936 + $0x8] sm:$0xff]
  %v939 = vld [vmem:[%s936 + $0x10] sm:$0xff]
  %v940 = vld [vmem:[%s936 + $0x18] sm:$0xff]
  %v941 = vunpack.c.l.bf16 %v937
  %v942 = vunpack.c.h.bf16 %v937
  %v943 = vunpack.c.l.bf16 %v938
  %v944 = vunpack.c.h.bf16 %v938
  %v945 = vunpack.c.l.bf16 %v939
  %v946 = vunpack.c.h.bf16 %v939
  %v947 = vunpack.c.l.bf16 %v940
  %v948 = vunpack.c.h.bf16 %v940
  %949 = vmatprep.subr.bf16.mxu0 %v194
  %950 = vmatpush1.bf16.msra.mxu0 %v193
  %951 = vmatprep.subr.bf16.mxu0 %v190
  %952 = vmatpush1.bf16.msra.mxu0 %v189
  %953 = vmatprep.subr.bf16.mxu0 %v186
  %954 = vmatpush1.bf16.msra.mxu0 %v185
  %955 = vmatprep.subr.bf16.mxu0 %v182
  %956 = vmatpush1.bf16.msra.mxu0 %v181
  %957 = vmatprep.subr.bf16.mxu0 %v178
  %958 = vmatpush1.bf16.msra.mxu0 %v177
  %959 = vmatprep.subr.bf16.mxu0 %v174
  %960 = vmatpush1.bf16.msra.mxu0 %v173
  %961 = vmatprep.subr.bf16.mxu0 %v170
  %962 = vmatpush1.bf16.msra.mxu0 %v169
  %963 = vmatprep.subr.bf16.mxu0 %v166
  %964 = vmatpush1.bf16.msra.mxu0 %v165
  %965 = vmatprep.subr.bf16.mxu0 0
  %966 = vmatpush2.bf16.msra.mxu0 0
  %967 = vmatprep.subr.bf16.mxu0 0
  %968 = vmatpush2.bf16.msra.mxu0 0
  %969 = vmatprep.subr.bf16.mxu0 0
  %970 = vmatpush2.bf16.msra.mxu0 0
  %971 = vmatprep.subr.bf16.mxu0 0
  %972 = vmatpush2.bf16.msra.mxu0 0
  %973 = vmatprep.subr.bf16.mxu0 0
  %974 = vmatpush2.bf16.msra.mxu0 0
  %975 = vmatprep.subr.bf16.mxu0 0
  %976 = vmatpush2.bf16.msra.mxu0 0
  %977 = vmatprep.subr.bf16.mxu0 0
  %978 = vmatpush2.bf16.msra.mxu0 0
  %979 = vmatprep.subr.bf16.mxu0 0
  %980 = vmatpush2.bf16.msra.mxu0 0
  %981 = vmatprep.mubr.bf16.mxu0 0
  %982 = vmatmul.mubr.bf16.gmra.mxu0 %v935
  %v983 = vpop.f32.mrf.mxu0
  %v984 = vadd.f32 0.0, %v983
  %v985 = vpop.f32.mrf.mxu0
  %v986 = vadd.f32 0.0, %v985
  %v987 = vpop.f32.mrf.mxu0
  %v988 = vadd.f32 0.0, %v987
  %v989 = vpop.f32.mrf.mxu0
  %v990 = vadd.f32 0.0, %v989
  %991 = vdwg.mxu0
  %992 = vmatprep.subr.bf16.mxu0 %v196
  %993 = vmatpush1.bf16.msra.mxu0 %v195
  %994 = vmatprep.subr.bf16.mxu0 %v192
  %995 = vmatpush1.bf16.msra.mxu0 %v191
  %996 = vmatprep.subr.bf16.mxu0 %v188
  %997 = vmatpush1.bf16.msra.mxu0 %v187
  %998 = vmatprep.subr.bf16.mxu0 %v184
  %999 = vmatpush1.bf16.msra.mxu0 %v183
  %1000 = vmatprep.subr.bf16.mxu0 %v180
  %1001 = vmatpush1.bf16.msra.mxu0 %v179
  %1002 = vmatprep.subr.bf16.mxu0 %v176
  %1003 = vmatpush1.bf16.msra.mxu0 %v175
  %1004 = vmatprep.subr.bf16.mxu0 %v172
  %1005 = vmatpush1.bf16.msra.mxu0 %v171
  %1006 = vmatprep.subr.bf16.mxu0 %v168
  %1007 = vmatpush1.bf16.msra.mxu0 %v167
  %1008 = vmatprep.subr.bf16.mxu0 0
  %1009 = vmatpush2.bf16.msra.mxu0 0
  %1010 = vmatprep.subr.bf16.mxu0 0
  %1011 = vmatpush2.bf16.msra.mxu0 0
  %1012 = vmatprep.subr.bf16.mxu0 0
  %1013 = vmatpush2.bf16.msra.mxu0 0
  %1014 = vmatprep.subr.bf16.mxu0 0
  %1015 = vmatpush2.bf16.msra.mxu0 0
  %1016 = vmatprep.subr.bf16.mxu0 0
  %1017 = vmatpush2.bf16.msra.mxu0 0
  %1018 = vmatprep.subr.bf16.mxu0 0
  %1019 = vmatpush2.bf16.msra.mxu0 0
  %1020 = vmatprep.subr.bf16.mxu0 0
  %1021 = vmatpush2.bf16.msra.mxu0 0
  %1022 = vmatprep.subr.bf16.mxu0 0
  %1023 = vmatpush2.bf16.msra.mxu0 0
  %1024 = vmatprep.mubr.bf16.mxu0 0
  %1025 = vmatmul.mubr.bf16.gmra.mxu0 %v935
  %v1026 = vpop.f32.mrf.mxu0
  %v1027 = vadd.f32 0.0, %v1026
  %v1028 = vpop.f32.mrf.mxu0
  %v1029 = vadd.f32 0.0, %v1028
  %v1030 = vpop.f32.mrf.mxu0
  %v1031 = vadd.f32 0.0, %v1030
  %v1032 = vpop.f32.mrf.mxu0
  %v1033 = vadd.f32 0.0, %v1032
  %1034 = vdwg.mxu0
  %v1035 = vadd.f32 %v941, %v984
  %v1036 = vadd.f32 %v942, %v986
  %v1037 = vadd.f32 %v943, %v1027
  %v1038 = vadd.f32 %v944, %v1029
  %v1039 = vadd.f32 %v945, %v988
  %v1040 = vadd.f32 %v946, %v990
  %v1041 = vadd.f32 %v947, %v1031
  %v1042 = vadd.f32 %v948, %v1033
  %v1043 = vmul.f32 %v1035, 0.5
  %v1044 = vmul.f32 %v1039, 0.5
  %v1045 = vtanh.pop %v1043
  %v1046 = vtanh.pop %v1044
  %v1047 = vadd.f32 %v1045, 1.0
  %v1048 = vadd.f32 %v1046, 1.0
  %v1049 = vmul.f32 %v1047, 0.5
  %v1050 = vmul.f32 %v1048, 0.5
  %v1051 = vmul.f32 %v1036, 0.5
  %v1052 = vmul.f32 %v1040, 0.5
  %v1053 = vtanh.pop %v1051
  %v1054 = vtanh.pop %v1052
  %v1055 = vadd.f32 %v1053, 1.0
  %v1056 = vadd.f32 %v1054, 1.0
  %v1057 = vmul.f32 %v1055, 0.5
  %v1058 = vmul.f32 %v1056, 0.5
  %v1059 = vtanh.pop %v1037
  %v1060 = vtanh.pop %v1041
  %v1061 = vmul.f32 %v1038, 0.5
  %v1062 = vmul.f32 %v1042, 0.5
  %v1063 = vtanh.pop %v1061
  %v1064 = vtanh.pop %v1062
  %v1065 = vadd.f32 %v1063, 1.0
  %v1066 = vadd.f32 %v1064, 1.0
  %v1067 = vmul.f32 %v1065, 0.5
  %v1068 = vmul.f32 %v1066, 0.5
  %v1069 = vmul.f32 %v1057, %v929
  %v1070 = vmul.f32 %v1058, %v930
  %v1071 = vmul.f32 %v1049, %v1059
  %v1072 = vmul.f32 %v1050, %v1060
  %v1073 = vadd.f32 %v1069, %v1071
  %v1074 = vadd.f32 %v1070, %v1072
  %v1075 = vtanh.pop %v1073
  %v1076 = vtanh.pop %v1074
  %v1077 = vmul.f32 %v1067, %v1075
  %v1078 = vmul.f32 %v1068, %v1076
  %v1079 = vpack.c.bf16 %v1078, %v1077
  %s1080 = scalar_lea.vmem %s0, 192
  %v1081 = vld [vmem:[%s1080] sm:$0xff]
  %v1082 = vld [vmem:[%s1080 + $0x8] sm:$0xff]
  %v1083 = vld [vmem:[%s1080 + $0x10] sm:$0xff]
  %v1084 = vld [vmem:[%s1080 + $0x18] sm:$0xff]
  %v1085 = vunpack.c.l.bf16 %v1081
  %v1086 = vunpack.c.h.bf16 %v1081
  %v1087 = vunpack.c.l.bf16 %v1082
  %v1088 = vunpack.c.h.bf16 %v1082
  %v1089 = vunpack.c.l.bf16 %v1083
  %v1090 = vunpack.c.h.bf16 %v1083
  %v1091 = vunpack.c.l.bf16 %v1084
  %v1092 = vunpack.c.h.bf16 %v1084
  %1093 = vmatprep.subr.bf16.mxu0 %v194
  %1094 = vmatpush1.bf16.msra.mxu0 %v193
  %1095 = vmatprep.subr.bf16.mxu0 %v190
  %1096 = vmatpush1.bf16.msra.mxu0 %v189
  %1097 = vmatprep.subr.bf16.mxu0 %v186
  %1098 = vmatpush1.bf16.msra.mxu0 %v185
  %1099 = vmatprep.subr.bf16.mxu0 %v182
  %1100 = vmatpush1.bf16.msra.mxu0 %v181
  %1101 = vmatprep.subr.bf16.mxu0 %v178
  %1102 = vmatpush1.bf16.msra.mxu0 %v177
  %1103 = vmatprep.subr.bf16.mxu0 %v174
  %1104 = vmatpush1.bf16.msra.mxu0 %v173
  %1105 = vmatprep.subr.bf16.mxu0 %v170
  %1106 = vmatpush1.bf16.msra.mxu0 %v169
  %1107 = vmatprep.subr.bf16.mxu0 %v166
  %1108 = vmatpush1.bf16.msra.mxu0 %v165
  %1109 = vmatprep.subr.bf16.mxu0 0
  %1110 = vmatpush2.bf16.msra.mxu0 0
  %1111 = vmatprep.subr.bf16.mxu0 0
  %1112 = vmatpush2.bf16.msra.mxu0 0
  %1113 = vmatprep.subr.bf16.mxu0 0
  %1114 = vmatpush2.bf16.msra.mxu0 0
  %1115 = vmatprep.subr.bf16.mxu0 0
  %1116 = vmatpush2.bf16.msra.mxu0 0
  %1117 = vmatprep.subr.bf16.mxu0 0
  %1118 = vmatpush2.bf16.msra.mxu0 0
  %1119 = vmatprep.subr.bf16.mxu0 0
  %1120 = vmatpush2.bf16.msra.mxu0 0
  %1121 = vmatprep.subr.bf16.mxu0 0
  %1122 = vmatpush2.bf16.msra.mxu0 0
  %1123 = vmatprep.subr.bf16.mxu0 0
  %1124 = vmatpush2.bf16.msra.mxu0 0
  %1125 = vmatprep.mubr.bf16.mxu0 0
  %1126 = vmatmul.mubr.bf16.gmra.mxu0 %v1079
  %v1127 = vpop.f32.mrf.mxu0
  %v1128 = vadd.f32 0.0, %v1127
  %v1129 = vpop.f32.mrf.mxu0
  %v1130 = vadd.f32 0.0, %v1129
  %v1131 = vpop.f32.mrf.mxu0
  %v1132 = vadd.f32 0.0, %v1131
  %v1133 = vpop.f32.mrf.mxu0
  %v1134 = vadd.f32 0.0, %v1133
  %1135 = vdwg.mxu0
  %1136 = vmatprep.subr.bf16.mxu0 %v196
  %1137 = vmatpush1.bf16.msra.mxu0 %v195
  %1138 = vmatprep.subr.bf16.mxu0 %v192
  %1139 = vmatpush1.bf16.msra.mxu0 %v191
  %1140 = vmatprep.subr.bf16.mxu0 %v188
  %1141 = vmatpush1.bf16.msra.mxu0 %v187
  %1142 = vmatprep.subr.bf16.mxu0 %v184
  %1143 = vmatpush1.bf16.msra.mxu0 %v183
  %1144 = vmatprep.subr.bf16.mxu0 %v180
  %1145 = vmatpush1.bf16.msra.mxu0 %v179
  %1146 = vmatprep.subr.bf16.mxu0 %v176
  %1147 = vmatpush1.bf16.msra.mxu0 %v175
  %1148 = vmatprep.subr.bf16.mxu0 %v172
  %1149 = vmatpush1.bf16.msra.mxu0 %v171
  %1150 = vmatprep.subr.bf16.mxu0 %v168
  %1151 = vmatpush1.bf16.msra.mxu0 %v167
  %1152 = vmatprep.subr.bf16.mxu0 0
  %1153 = vmatpush2.bf16.msra.mxu0 0
  %1154 = vmatprep.subr.bf16.mxu0 0
  %1155 = vmatpush2.bf16.msra.mxu0 0
  %1156 = vmatprep.subr.bf16.mxu0 0
  %1157 = vmatpush2.bf16.msra.mxu0 0
  %1158 = vmatprep.subr.bf16.mxu0 0
  %1159 = vmatpush2.bf16.msra.mxu0 0
  %1160 = vmatprep.subr.bf16.mxu0 0
  %1161 = vmatpush2.bf16.msra.mxu0 0
  %1162 = vmatprep.subr.bf16.mxu0 0
  %1163 = vmatpush2.bf16.msra.mxu0 0
  %1164 = vmatprep.subr.bf16.mxu0 0
  %1165 = vmatpush2.bf16.msra.mxu0 0
  %1166 = vmatprep.subr.bf16.mxu0 0
  %1167 = vmatpush2.bf16.msra.mxu0 0
  %1168 = vmatprep.mubr.bf16.mxu0 0
  %1169 = vmatmul.mubr.bf16.gmra.mxu0 %v1079
  %v1170 = vpop.f32.mrf.mxu0
  %v1171 = vadd.f32 0.0, %v1170
  %v1172 = vpop.f32.mrf.mxu0
  %v1173 = vadd.f32 0.0, %v1172
  %v1174 = vpop.f32.mrf.mxu0
  %v1175 = vadd.f32 0.0, %v1174
  %v1176 = vpop.f32.mrf.mxu0
  %v1177 = vadd.f32 0.0, %v1176
  %1178 = vdwg.mxu0
  %v1179 = vadd.f32 %v1085, %v1128
  %v1180 = vadd.f32 %v1086, %v1130
  %v1181 = vadd.f32 %v1087, %v1171
  %v1182 = vadd.f32 %v1088, %v1173
  %v1183 = vadd.f32 %v1089, %v1132
  %v1184 = vadd.f32 %v1090, %v1134
  %v1185 = vadd.f32 %v1091, %v1175
  %v1186 = vadd.f32 %v1092, %v1177
  %v1187 = vmul.f32 %v1179, 0.5
  %v1188 = vmul.f32 %v1183, 0.5
  %v1189 = vtanh.pop %v1187
  %v1190 = vtanh.pop %v1188
  %v1191 = vadd.f32 %v1189, 1.0
  %v1192 = vadd.f32 %v1190, 1.0
  %v1193 = vmul.f32 %v1191, 0.5
  %v1194 = vmul.f32 %v1192, 0.5
  %v1195 = vmul.f32 %v1180, 0.5
  %v1196 = vmul.f32 %v1184, 0.5
  %v1197 = vtanh.pop %v1195
  %v1198 = vtanh.pop %v1196
  %v1199 = vadd.f32 %v1197, 1.0
  %v1200 = vadd.f32 %v1198, 1.0
  %v1201 = vmul.f32 %v1199, 0.5
  %v1202 = vmul.f32 %v1200, 0.5
  %v1203 = vtanh.pop %v1181
  %v1204 = vtanh.pop %v1185
  %v1205 = vmul.f32 %v1182, 0.5
  %v1206 = vmul.f32 %v1186, 0.5
  %v1207 = vtanh.pop %v1205
  %v1208 = vtanh.pop %v1206
  %v1209 = vadd.f32 %v1207, 1.0
  %v1210 = vadd.f32 %v1208, 1.0
  %v1211 = vmul.f32 %v1209, 0.5
  %v1212 = vmul.f32 %v1210, 0.5
  %v1213 = vmul.f32 %v1201, %v1073
  %v1214 = vmul.f32 %v1202, %v1074
  %v1215 = vmul.f32 %v1193, %v1203
  %v1216 = vmul.f32 %v1194, %v1204
  %v1217 = vadd.f32 %v1213, %v1215
  %v1218 = vadd.f32 %v1214, %v1216
  %v1219 = vtanh.pop %v1217
  %v1220 = vtanh.pop %v1218
  %v1221 = vmul.f32 %v1211, %v1219
  %v1222 = vmul.f32 %v1212, %v1220
  %v1223 = vpack.c.bf16 %v1222, %v1221
  %s1224 = scalar_lea.vmem %s0, 224
  %v1225 = vld [vmem:[%s1224] sm:$0xff]
  %v1226 = vld [vmem:[%s1224 + $0x8] sm:$0xff]
  %v1227 = vld [vmem:[%s1224 + $0x10] sm:$0xff]
  %v1228 = vld [vmem:[%s1224 + $0x18] sm:$0xff]
  %v1229 = vunpack.c.l.bf16 %v1225
  %v1230 = vunpack.c.h.bf16 %v1225
  %v1231 = vunpack.c.l.bf16 %v1226
  %v1232 = vunpack.c.h.bf16 %v1226
  %v1233 = vunpack.c.l.bf16 %v1227
  %v1234 = vunpack.c.h.bf16 %v1227
  %v1235 = vunpack.c.l.bf16 %v1228
  %v1236 = vunpack.c.h.bf16 %v1228
  %1237 = vmatprep.subr.bf16.mxu0 %v194
  %1238 = vmatpush1.bf16.msra.mxu0 %v193
  %1239 = vmatprep.subr.bf16.mxu0 %v190
  %1240 = vmatpush1.bf16.msra.mxu0 %v189
  %1241 = vmatprep.subr.bf16.mxu0 %v186
  %1242 = vmatpush1.bf16.msra.mxu0 %v185
  %1243 = vmatprep.subr.bf16.mxu0 %v182
  %1244 = vmatpush1.bf16.msra.mxu0 %v181
  %1245 = vmatprep.subr.bf16.mxu0 %v178
  %1246 = vmatpush1.bf16.msra.mxu0 %v177
  %1247 = vmatprep.subr.bf16.mxu0 %v174
  %1248 = vmatpush1.bf16.msra.mxu0 %v173
  %1249 = vmatprep.subr.bf16.mxu0 %v170
  %1250 = vmatpush1.bf16.msra.mxu0 %v169
  %1251 = vmatprep.subr.bf16.mxu0 %v166
  %1252 = vmatpush1.bf16.msra.mxu0 %v165
  %1253 = vmatprep.subr.bf16.mxu0 0
  %1254 = vmatpush2.bf16.msra.mxu0 0
  %1255 = vmatprep.subr.bf16.mxu0 0
  %1256 = vmatpush2.bf16.msra.mxu0 0
  %1257 = vmatprep.subr.bf16.mxu0 0
  %1258 = vmatpush2.bf16.msra.mxu0 0
  %1259 = vmatprep.subr.bf16.mxu0 0
  %1260 = vmatpush2.bf16.msra.mxu0 0
  %1261 = vmatprep.subr.bf16.mxu0 0
  %1262 = vmatpush2.bf16.msra.mxu0 0
  %1263 = vmatprep.subr.bf16.mxu0 0
  %1264 = vmatpush2.bf16.msra.mxu0 0
  %1265 = vmatprep.subr.bf16.mxu0 0
  %1266 = vmatpush2.bf16.msra.mxu0 0
  %1267 = vmatprep.subr.bf16.mxu0 0
  %1268 = vmatpush2.bf16.msra.mxu0 0
  %1269 = vmatprep.mubr.bf16.mxu0 0
  %1270 = vmatmul.mubr.bf16.gmra.mxu0 %v1223
  %v1271 = vpop.f32.mrf.mxu0
  %v1272 = vadd.f32 0.0, %v1271
  %v1273 = vpop.f32.mrf.mxu0
  %v1274 = vadd.f32 0.0, %v1273
  %v1275 = vpop.f32.mrf.mxu0
  %v1276 = vadd.f32 0.0, %v1275
  %v1277 = vpop.f32.mrf.mxu0
  %v1278 = vadd.f32 0.0, %v1277
  %1279 = vdwg.mxu0
  %1280 = vmatprep.subr.bf16.mxu0 %v196
  %1281 = vmatpush1.bf16.msra.mxu0 %v195
  %1282 = vmatprep.subr.bf16.mxu0 %v192
  %1283 = vmatpush1.bf16.msra.mxu0 %v191
  %1284 = vmatprep.subr.bf16.mxu0 %v188
  %1285 = vmatpush1.bf16.msra.mxu0 %v187
  %1286 = vmatprep.subr.bf16.mxu0 %v184
  %1287 = vmatpush1.bf16.msra.mxu0 %v183
  %1288 = vmatprep.subr.bf16.mxu0 %v180
  %1289 = vmatpush1.bf16.msra.mxu0 %v179
  %1290 = vmatprep.subr.bf16.mxu0 %v176
  %1291 = vmatpush1.bf16.msra.mxu0 %v175
  %1292 = vmatprep.subr.bf16.mxu0 %v172
  %1293 = vmatpush1.bf16.msra.mxu0 %v171
  %1294 = vmatprep.subr.bf16.mxu0 %v168
  %1295 = vmatpush1.bf16.msra.mxu0 %v167
  %1296 = vmatprep.subr.bf16.mxu0 0
  %1297 = vmatpush2.bf16.msra.mxu0 0
  %1298 = vmatprep.subr.bf16.mxu0 0
  %1299 = vmatpush2.bf16.msra.mxu0 0
  %1300 = vmatprep.subr.bf16.mxu0 0
  %1301 = vmatpush2.bf16.msra.mxu0 0
  %1302 = vmatprep.subr.bf16.mxu0 0
  %1303 = vmatpush2.bf16.msra.mxu0 0
  %1304 = vmatprep.subr.bf16.mxu0 0
  %1305 = vmatpush2.bf16.msra.mxu0 0
  %1306 = vmatprep.subr.bf16.mxu0 0
  %1307 = vmatpush2.bf16.msra.mxu0 0
  %1308 = vmatprep.subr.bf16.mxu0 0
  %1309 = vmatpush2.bf16.msra.mxu0 0
  %1310 = vmatprep.subr.bf16.mxu0 0
  %1311 = vmatpush2.bf16.msra.mxu0 0
  %1312 = vmatprep.mubr.bf16.mxu0 0
  %1313 = vmatmul.mubr.bf16.gmra.mxu0 %v1223
  %v1314 = vpop.f32.mrf.mxu0
  %v1315 = vadd.f32 0.0, %v1314
  %v1316 = vpop.f32.mrf.mxu0
  %v1317 = vadd.f32 0.0, %v1316
  %v1318 = vpop.f32.mrf.mxu0
  %v1319 = vadd.f32 0.0, %v1318
  %v1320 = vpop.f32.mrf.mxu0
  %v1321 = vadd.f32 0.0, %v1320
  %1322 = vdwg.mxu0
  %v1323 = vadd.f32 %v1229, %v1272
  %v1324 = vadd.f32 %v1230, %v1274
  %v1325 = vadd.f32 %v1231, %v1315
  %v1326 = vadd.f32 %v1232, %v1317
  %v1327 = vadd.f32 %v1233, %v1276
  %v1328 = vadd.f32 %v1234, %v1278
  %v1329 = vadd.f32 %v1235, %v1319
  %v1330 = vadd.f32 %v1236, %v1321
  %v1331 = vmul.f32 %v1323, 0.5
  %v1332 = vmul.f32 %v1327, 0.5
  %v1333 = vtanh.pop %v1331
  %v1334 = vtanh.pop %v1332
  %v1335 = vadd.f32 %v1333, 1.0
  %v1336 = vadd.f32 %v1334, 1.0
  %v1337 = vmul.f32 %v1335, 0.5
  %v1338 = vmul.f32 %v1336, 0.5
  %v1339 = vmul.f32 %v1324, 0.5
  %v1340 = vmul.f32 %v1328, 0.5
  %v1341 = vtanh.pop %v1339
  %v1342 = vtanh.pop %v1340
  %v1343 = vadd.f32 %v1341, 1.0
  %v1344 = vadd.f32 %v1342, 1.0
  %v1345 = vmul.f32 %v1343, 0.5
  %v1346 = vmul.f32 %v1344, 0.5
  %v1347 = vtanh.pop %v1325
  %v1348 = vtanh.pop %v1329
  %v1349 = vmul.f32 %v1326, 0.5
  %v1350 = vmul.f32 %v1330, 0.5
  %v1351 = vtanh.pop %v1349
  %v1352 = vtanh.pop %v1350
  %v1353 = vadd.f32 %v1351, 1.0
  %v1354 = vadd.f32 %v1352, 1.0
  %v1355 = vmul.f32 %v1353, 0.5
  %v1356 = vmul.f32 %v1354, 0.5
  %v1357 = vmul.f32 %v1345, %v1217
  %v1358 = vmul.f32 %v1346, %v1218
  %v1359 = vmul.f32 %v1337, %v1347
  %v1360 = vmul.f32 %v1338, %v1348
  %v1361 = vadd.f32 %v1357, %v1359
  %v1362 = vadd.f32 %v1358, %v1360
  %v1363 = vtanh.pop %v1361
  %v1364 = vtanh.pop %v1362
  %v1365 = vmul.f32 %v1355, %v1363
  %v1366 = vmul.f32 %v1356, %v1364
  %1367 = vst [vmem:[#allocation2] sm:$0xff] %v1365
  %1368 = vst [vmem:[#allocation2 + $0x8] sm:$0xff] %v1366
  %1369 = vst [vmem:[#allocation3] sm:$0xff] %v1361
  %1370 = vst [vmem:[#allocation3 + $0x8] sm:$0xff] %v1362
  // Predicated region
  $region14: #{rnn_model_forward.1} parent=0 // pred_check
    %p1371 = pneg %p12
  $region15: #{rnn_model_forward.1} parent=0 // pred_check_branch
    %1373 = sbr.rel (%p1371) target = $region17
  $region16: #{rnn_model_forward.1} parent=0 // pred_region
    %1374 = vst [vmem:[%s2] sm:$0xff] %v1365
    %1375 = vst [vmem:[%s2 + $0x8] sm:$0xff] %v1366
  $region17: #{rnn_model_forward.1} parent=0 // pred_fallthru
    _
  // Predicated region
  $region18: #{rnn_model_forward.1} parent=0 // pred_check
    _
  $region19: #{rnn_model_forward.1} parent=0 // pred_check_branch
    %1377 = sbr.rel (0) target = $region21
  $region20: #{rnn_model_forward.1} parent=0 // pred_region
    _
  $region21: #{rnn_model_forward.1} parent=0 // pred_fallthru
    _
  // Predicated region
  $region22: #{rnn_model_forward.1} parent=0 // pred_check
    _
  $region23: #{rnn_model_forward.1} parent=0 // pred_check_branch
    %1379 = sbr.rel (0) target = $region25
  $region24: #{rnn_model_forward.1} parent=0 // pred_region
    _
  $region25: #{rnn_model_forward.1} parent=0 // pred_fallthru
    _

</llo_original>
